<compile_context>
chip_gen: v7x
topology: tpu7x:2x2x1
jax: 0.10.0
libtpu: 0.0.40
codegen_flags: <defaults>
</compile_context>

<pallas_src>
import math
from functools import partial

import jax
import jax.numpy as jnp
from jax import lax
from jax.experimental import pallas as pl
from jax.experimental.pallas import tpu as pltpu


def _attn_kernel(xq_ref, k_ref, xkv_ref, wqt_ref, att_ref, dist_ref, *, n_real):
    """One (batch-tile, q-row-tile) step of self-attention.

    xq_ref:   (bt, tq,    dim_in)  Q-row tile of x                (input dtype)
    k_ref:    (bt, n_pad, dim_k)   precomputed K = x @ Wk^T       (input dtype)
    xkv_ref:  (bt, n_pad, dim_in)  full (padded) sequence, V = x  (input dtype)
    wqt_ref:  (dim_in, dim_k)      pre-transposed, pre-scaled Wq  (input dtype)
    att_ref:  (bt, tq,    dim_in)
    dist_ref: (bt, tq,    n_pad)
    """
    xq = xq_ref[...]
    k = k_ref[...]
    xkv = xkv_ref[...]
    wqt = wqt_ref[...]

    bt, tq, dim_in = xq.shape
    n_pad = k.shape[1]

    # Q projection for this row tile only (never recomputed across tiles).
    q = jnp.dot(xq.reshape(bt * tq, dim_in), wqt,
                preferred_element_type=jnp.float32)
    # Keep MXU operands in the input dtype (bf16 stays bf16) for the big matmul.
    q = q.reshape(bt, tq, -1).astype(xq.dtype)

    # scores = q @ k^T (batched, contracting the last axes), f32 accumulation.
    scores = jnp.einsum("bqk,bnk->bqn", q, k,
                        preferred_element_type=jnp.float32)      # (bt, tq, n_pad)

    if n_pad != n_real:  # static: mask padded key columns before the softmax.
        col = lax.broadcasted_iota(jnp.int32, scores.shape, 2)
        scores = jnp.where(col < n_real, scores, jnp.float32(-1e30))

    # Numerically stable softmax along the key axis (f32).
    m = jnp.max(scores, axis=-1, keepdims=True)
    e = jnp.exp(scores - m)
    denom = jnp.sum(e, axis=-1, keepdims=True)
    inv = 1.0 / denom                          # exact: rows sum to 1 (f32 rounding)
    dist = (e * inv).astype(dist_ref.dtype)    # single cast, reused below

    # att = dist @ v with v = x; MXU operands in the input/output dtype.
    att = jnp.einsum("bqn,bnd->bqd", dist, xkv,
                     preferred_element_type=jnp.float32)

    att_ref[...] = att.astype(att_ref.dtype)
    dist_ref[...] = dist


def _round_up(v, m):
    return ((v + m - 1) // m) * m


def _vmem_budget_bytes():
    """Per-generation scoped-VMEM budget (v7x: 64 MiB phys, v5e/v6e: 128 MiB)."""
    cap = None
    try:
        info = pltpu.get_tpu_info()
        for name in ("vmem_capacity_bytes", "vmem_size_bytes", "vmem_bytes"):
            v = getattr(info, name, None)
            if v:
                cap = int(v)
                break
    except Exception:
        cap = None
    if not cap:
        cap = 64 * 1024 * 1024  # conservative default (v7x physical VMEM)
    # Leave headroom for Mosaic internal scratch; never request more than 100 MiB.
    return int(min(cap * 3 // 4, 100 * 1024 * 1024))


def _per_step_bytes(bt, tq, n_pad, dim_in, dim_k, isz):
    """Rough VMEM bytes for one grid step (double-buffered tiles + f32 temps)."""
    dbl = 2
    tiles = (
        dbl * bt * tq * dim_in * isz          # Q-row tile of x
        + dbl * bt * n_pad * dim_k * isz      # K block
        + dbl * bt * n_pad * dim_in * isz     # V (= x) block
        + dbl * dim_in * dim_k * isz          # Wq^T
        + dbl * bt * tq * dim_in * isz        # att out tile
        + dbl * bt * tq * n_pad * isz         # dist out tile
    )
    temps = (
        4 * bt * tq * n_pad * 4               # scores / exp / dist f32 temporaries
        + bt * (tq + n_pad) * dim_k * 4
        + bt * tq * dim_in * 4
    )
    return tiles + temps


def _pick_tiles(batch, n_pad, dim_in, dim_k, isz):
    """Choose (q-row tile, batch tile, vmem_limit) from the per-generation budget."""
    budget = _vmem_budget_bytes()
    cands = [t for t in (2048, 1024, 512, 256, 128) if t <= n_pad and n_pad % t == 0]
    if n_pad not in cands:
        cands.append(n_pad)
    cands.sort(reverse=True)
    tq = cands[-1]
    for t in cands:
        if _per_step_bytes(1, t, n_pad, dim_in, dim_k, isz) <= budget:
            tq = t
            break
    # TODO(synk): for very large n (per-step bytes > budget even at tq=128),
    # stream K/V over the key axis with an inner pltpu.emit_pipeline + online
    # softmax instead of keeping the full (n_pad, dim_in) block resident.

    # Small-shape regime: whole padded sequence fits in one q tile -> fold a few
    # batch elements per grid step to amortize the per-step overhead.
    bt = 1
    if tq == n_pad:
        for cand in (8, 4, 2):
            if batch % cand == 0 and _per_step_bytes(
                    cand, tq, n_pad, dim_in, dim_k, isz) <= budget:
                bt = cand
                break

    need = _per_step_bytes(bt, tq, n_pad, dim_in, dim_k, isz)
    vmem_limit = int(min(max(need + (4 << 20), 32 << 20), budget))
    return tq, bt, vmem_limit


def self_attention(x, wq, wk):
    """x: (batch, n, dim_in); wq, wk: (dim_k, dim_in) nn.Linear weights (no bias).

    Returns (att, dist) exactly like the PyTorch module's forward."""
    batch, n, dim_in = x.shape
    dim_k = wq.shape[0]
    norm_fact = 1.0 / math.sqrt(dim_k)

    # Pad the sequence axis to a lane-dense multiple of 128 (dist is the O(n^2)
    # writeback, so unmasked 128-wide stores matter most).
    n_pad = _round_up(n, 128)
    x_pad = jnp.pad(x, ((0, 0), (0, n_pad - n), (0, 0))) if n_pad != n else x

    # One-time XLA-side prep:
    #  * K = x @ Wk^T computed once (no per-Q-tile recompute inside the kernel).
    #  * Wq transposed to (dim_in, dim_k) with the 1/sqrt(dim_k) scale baked in.
    k = jnp.einsum("bnd,kd->bnk", x_pad, wk).astype(x.dtype)   # (batch, n_pad, dim_k)
    wqt = (wq.T * norm_fact).astype(x.dtype)                   # (dim_in, dim_k)

    itemsize = jnp.dtype(x.dtype).itemsize
    tq, bt, vmem_limit = _pick_tiles(batch, n_pad, dim_in, dim_k, itemsize)
    grid = (batch // bt, n_pad // tq)

    att_pad, dist_pad = pl.pallas_call(
        partial(_attn_kernel, n_real=n),
        out_shape=(
            jax.ShapeDtypeStruct((batch, n_pad, dim_in), x.dtype),
            jax.ShapeDtypeStruct((batch, n_pad, n_pad), x.dtype),
        ),
        grid_spec=pltpu.PrefetchScalarGridSpec(
            num_scalar_prefetch=0,
            grid=grid,
            in_specs=[
                pl.BlockSpec((bt, tq, dim_in), lambda b, qi: (b, qi, 0)),    # Q rows
                pl.BlockSpec((bt, n_pad, dim_k), lambda b, qi: (b, 0, 0)),   # K (precomputed)
                pl.BlockSpec((bt, n_pad, dim_in), lambda b, qi: (b, 0, 0)),  # V = x (full seq)
                pl.BlockSpec((dim_in, dim_k), lambda b, qi: (0, 0)),         # Wq^T (scaled)
            ],
            out_specs=[
                pl.BlockSpec((bt, tq, dim_in), lambda b, qi: (b, qi, 0)),
                pl.BlockSpec((bt, tq, n_pad), lambda b, qi: (b, qi, 0)),
            ],
        ),
        compiler_params=pltpu.CompilerParams(
            dimension_semantics=("parallel", "parallel"),
            vmem_limit_bytes=vmem_limit,
        ),
    )(x_pad, k, x_pad, wqt)

    if n_pad != n:
        return att_pad[:, :n, :], dist_pad[:, :n, :n]
    return att_pad, dist_pad


def _reference(x, wq, wk):
    dim_k = wq.shape[0]
    q = jnp.einsum("bnd,kd->bnk", x, wq)
    k = jnp.einsum("bnd,kd->bnk", x, wk)
    scores = jnp.einsum("bik,bjk->bij", q, k) / math.sqrt(dim_k)
    dist = jax.nn.softmax(scores, axis=-1)
    att = jnp.einsum("bij,bjd->bid", dist, x)
    return att, dist


if __name__ == "__main__":
    # Small shapes consistent with the module's forward: x (batch, n, dim_in).
    batch, n, dim_in, dim_k = 2, 8, 32, 16
    key = jax.random.PRNGKey(0)
    kx, kq, kk = jax.random.split(key, 3)

    x = jax.random.normal(kx, (batch, n, dim_in), dtype=jnp.float32)
    # nn.Linear-style weights: (dim_out, dim_in), uniform(-1/sqrt(in), 1/sqrt(in))
    bound = 1.0 / math.sqrt(dim_in)
    wq = jax.random.uniform(kq, (dim_k, dim_in), jnp.float32, -bound, bound)
    wk = jax.random.uniform(kk, (dim_k, dim_in), jnp.float32, -bound, bound)

    att, dist = self_attention(x, wq, wk)
    att = jax.block_until_ready(att)
    dist = jax.block_until_ready(dist)

    att_ref, dist_ref = _reference(x, wq, wk)
    # Tolerance covers MXU precision differences vs the XLA einsum reference.
    assert jnp.allclose(att, att_ref, atol=2e-3, rtol=2e-3), "att mismatch"
    assert jnp.allclose(dist, dist_ref, atol=2e-3, rtol=2e-3), "dist mismatch"

    print("KERNEL_OK")
</pallas_src>

<mosaic_0001>
module attributes {stable_mosaic.version = 11 : i64} {
  func.func @_attn_kernel(%arg0: i32, %arg1: i32, %arg2: memref<2x128x32xf32, #tpu.memory_space<vmem>>, %arg3: memref<2x128x16xf32, #tpu.memory_space<vmem>>, %arg4: memref<2x128x32xf32, #tpu.memory_space<vmem>>, %arg5: memref<32x16xf32, #tpu.memory_space<vmem>>, %arg6: memref<2x128x32xf32, #tpu.memory_space<vmem>>, %arg7: memref<2x128x128xf32, #tpu.memory_space<vmem>>) attributes {dimension_semantics = [#tpu.dimension_semantics<parallel>, #tpu.dimension_semantics<parallel>], iteration_bounds = array<i64: 1, 1>, scalar_prefetch = 0 : i64, scratch_operands = 0 : i64, tpu.core_type = #tpu.core_type<tc>, window_params = [{transform_indices = @transform_0, window_bounds = array<i64: 2, 128, 32>}, {transform_indices = @transform_1, window_bounds = array<i64: 2, 128, 16>}, {transform_indices = @transform_2, window_bounds = array<i64: 2, 128, 32>}, {pipeline_mode = #tpu.pipeline_mode<synchronous>, transform_indices = @transform_3, window_bounds = array<i64: 32, 16>}, {transform_indices = @transform_4, window_bounds = array<i64: 2, 128, 32>}, {transform_indices = @transform_5, window_bounds = array<i64: 2, 128, 128>}]} {
    %c0 = arith.constant 0 : index
    %c0_0 = arith.constant 0 : index
    %c0_1 = arith.constant 0 : index
    %0 = vector.load %arg2[%c0, %c0_0, %c0_1] : memref<2x128x32xf32, #tpu.memory_space<vmem>>, vector<2x128x32xf32>
    %c0_2 = arith.constant 0 : index
    %c0_3 = arith.constant 0 : index
    %c0_4 = arith.constant 0 : index
    %1 = vector.load %arg3[%c0_2, %c0_3, %c0_4] : memref<2x128x16xf32, #tpu.memory_space<vmem>>, vector<2x128x16xf32>
    %c0_5 = arith.constant 0 : index
    %c0_6 = arith.constant 0 : index
    %c0_7 = arith.constant 0 : index
    %2 = vector.load %arg4[%c0_5, %c0_6, %c0_7] : memref<2x128x32xf32, #tpu.memory_space<vmem>>, vector<2x128x32xf32>
    %c0_8 = arith.constant 0 : index
    %c0_9 = arith.constant 0 : index
    %3 = vector.load %arg5[%c0_8, %c0_9] : memref<32x16xf32, #tpu.memory_space<vmem>>, vector<32x16xf32>
    %4 = vector.shape_cast %0 : vector<2x128x32xf32> to vector<256x32xf32>
    %cst = arith.constant dense<0.000000e+00> : vector<256x16xf32>
    %5 = tpu.matmul %4, %3, %cst {dimension_numbers = #tpu.dot_dimension_numbers<[1], [0], [0], [1], [0, 0, 1, 1], [], []>} : vector<256x32xf32>, vector<32x16xf32>, vector<256x16xf32> -> vector<256x16xf32>
    %6 = vector.shape_cast %5 : vector<256x16xf32> to vector<2x128x16xf32>
    "tpu.trace_start"() <{level = 10 : i32, message = "bqk,bnk->bqn"}> : () -> ()
    %cst_10 = arith.constant dense<0.000000e+00> : vector<2x128x128xf32>
    %7 = tpu.matmul %6, %1, %cst_10 {dimension_numbers = #tpu.dot_dimension_numbers<[2], [2], [1], [1], [0, 0, 0, 1, 1, 1], [0], [0]>} : vector<2x128x16xf32>, vector<2x128x16xf32>, vector<2x128x128xf32> -> vector<2x128x128xf32>
    "tpu.trace_stop"() : () -> ()
    %8 = tpu.iota {dimensions = array<i32: 2>} : vector<2x128x128xi32>
    %c8_i32 = arith.constant 8 : i32
    %9 = vector.broadcast %c8_i32 : i32 to vector<2x128x128xi32>
    %10 = arith.cmpi slt, %8, %9 : vector<2x128x128xi32>
    %cst_11 = arith.constant -1.000000e+30 : f32
    %11 = vector.broadcast %cst_11 : f32 to vector<2x128x128xf32>
    %12 = arith.select %10, %7, %11 : vector<2x128x128xi1>, vector<2x128x128xf32>
    %cst_12 = arith.constant dense<0xFF800000> : vector<2x128xf32>
    %13 = vector.multi_reduction <maximumf>, %12, %cst_12 [2] : vector<2x128x128xf32> to vector<2x128xf32>
    %14 = vector.shape_cast %13 : vector<2x128xf32> to vector<2x128x1xf32>
    %15 = vector.broadcast %14 : vector<2x128x1xf32> to vector<2x128x128xf32>
    %16 = arith.subf %12, %15 : vector<2x128x128xf32>
    %17 = math.exp %16 : vector<2x128x128xf32>
    %cst_13 = arith.constant dense<0.000000e+00> : vector<2x128xf32>
    %18 = vector.multi_reduction <add>, %17, %cst_13 [2] : vector<2x128x128xf32> to vector<2x128xf32>
    %19 = vector.shape_cast %18 : vector<2x128xf32> to vector<2x128x1xf32>
    %cst_14 = arith.constant 1.000000e+00 : f32
    %20 = vector.broadcast %cst_14 : f32 to vector<2x128x1xf32>
    %21 = arith.divf %20, %19 : vector<2x128x1xf32>
    %22 = vector.broadcast %21 : vector<2x128x1xf32> to vector<2x128x128xf32>
    %23 = arith.mulf %17, %22 : vector<2x128x128xf32>
    "tpu.trace_start"() <{level = 10 : i32, message = "bqn,bnd->bqd"}> : () -> ()
    %cst_15 = arith.constant dense<0.000000e+00> : vector<2x128x32xf32>
    %24 = tpu.matmul %23, %2, %cst_15 {dimension_numbers = #tpu.dot_dimension_numbers<[2], [1], [1], [2], [0, 0, 0, 1, 1, 2], [0], [0]>} : vector<2x128x128xf32>, vector<2x128x32xf32>, vector<2x128x32xf32> -> vector<2x128x32xf32>
    "tpu.trace_stop"() : () -> ()
    %c0_16 = arith.constant 0 : index
    %c0_17 = arith.constant 0 : index
    %c0_18 = arith.constant 0 : index
    %25 = vector.load %arg6[%c0_16, %c0_17, %c0_18] : memref<2x128x32xf32, #tpu.memory_space<vmem>>, vector<2x128x32xf32>
    tpu.vector_store %arg6[%c0_16, %c0_17, %c0_18], %24 {strides = array<i32>} : memref<2x128x32xf32, #tpu.memory_space<vmem>>, vector<2x128x32xf32>,
    %c0_19 = arith.constant 0 : index
    %c0_20 = arith.constant 0 : index
    %c0_21 = arith.constant 0 : index
    %26 = vector.load %arg7[%c0_19, %c0_20, %c0_21] : memref<2x128x128xf32, #tpu.memory_space<vmem>>, vector<2x128x128xf32>
    tpu.vector_store %arg7[%c0_19, %c0_20, %c0_21], %23 {strides = array<i32>} : memref<2x128x128xf32, #tpu.memory_space<vmem>>, vector<2x128x128xf32>,
    return
  }
  func.func @transform_0(%arg0: i32, %arg1: i32) -> (i32, i32, i32) {
    %c0_i32 = arith.constant 0 : i32
    %c0_i32_0 = arith.constant 0 : i32
    return %arg0, %arg1, %c0_i32 : i32, i32, i32
  }
  func.func @transform_1(%arg0: i32, %arg1: i32) -> (i32, i32, i32) {
    %c0_i32 = arith.constant 0 : i32
    %c0_i32_0 = arith.constant 0 : i32
    %c0_i32_1 = arith.constant 0 : i32
    return %arg0, %c0_i32, %c0_i32_0 : i32, i32, i32
  }
  func.func @transform_2(%arg0: i32, %arg1: i32) -> (i32, i32, i32) {
    %c0_i32 = arith.constant 0 : i32
    %c0_i32_0 = arith.constant 0 : i32
    %c0_i32_1 = arith.constant 0 : i32
    return %arg0, %c0_i32, %c0_i32_0 : i32, i32, i32
  }
  func.func @transform_3(%arg0: i32, %arg1: i32) -> (i32, i32) {
    %c0_i32 = arith.constant 0 : i32
    %c0_i32_0 = arith.constant 0 : i32
    %c0_i32_1 = arith.constant 0 : i32
    return %c0_i32, %c0_i32_0 : i32, i32
  }
  func.func @transform_4(%arg0: i32, %arg1: i32) -> (i32, i32, i32) {
    %c0_i32 = arith.constant 0 : i32
    %c0_i32_0 = arith.constant 0 : i32
    return %arg0, %arg1, %c0_i32 : i32, i32, i32
  }
  func.func @transform_5(%arg0: i32, %arg1: i32) -> (i32, i32, i32) {
    %c0_i32 = arith.constant 0 : i32
    %c0_i32_0 = arith.constant 0 : i32
    return %arg0, %arg1, %c0_i32 : i32, i32, i32
  }
}

</mosaic_0001>

<llo_original>
// kernel: tpu_custom_call.1
$region0: #{tpu_custom_call.1}
  #allocation0 [shape = 'u32[]', space=smem, size = 0x4, offset = 0x4, fixed_abs, tag = 'smem constant byte address 0x4 - core index']
  #allocation1 [shape = 'u32[144,128]{1,0:T(1,128)}', space=vmem, size = 0x12000, scoped, tag = 'internal scratch']
  %s0 = inlined_call_operand.vmem [shape: f32[2,128,32], index: 0, kind: input, shape index: {}]
  %s1 = inlined_call_operand.vmem [shape: f32[2,128,16], index: 1, kind: input, shape index: {}]
  %s2 = inlined_call_operand.vmem [shape: f32[2,128,32], index: 2, kind: input, shape index: {}]
  %s3 = inlined_call_operand.vmem [shape: f32[32,16], index: 3, kind: input, shape index: {}]
  %s4 = inlined_call_operand.vmem [shape: f32[2,128,32], index: 4, kind: output, shape index: {0}]
  %s5 = inlined_call_operand.hbm [shape: f32[2,128,128], index: 5, kind: output, shape index: {1}]
  %6 = xla_tuple %s4, %s5
  %s7 = sld [smem:[#allocation0]]
  $region34: #{tpu_custom_call.1} parent=0
    _
  %s9 = ssub.s32 1, %s7
  %s10 = scalar_select 0, %s9, %s7
  $region1: #{tpu_custom_call.1} parent=0
    #allocation2 [shape = 'u8[131072]{0}', space=vmem, size = 0x20000, scoped, tag = 'output window, operand 1, single buffered']
    #allocation3 [shape = 's32[1]{0}', space=sflag, size = 0x4, scoped, tag = 'scoped memory for tpu_custom_call.1']
    %11 = vsyncpa [#allocation3], 0
    // Predicated region
    $region2: #{tpu_custom_call.1} parent=1 // pred_check
      _
    $region3: #{tpu_custom_call.1} parent=1 // pred_check_branch
      %13 = sbr.rel (0) target = $region5
    $region4: #{tpu_custom_call.1} parent=1 // pred_region
      _
    $region5: #{tpu_custom_call.1} parent=1 // pred_fallthru
      _
    // Predicated region
    $region6: #{tpu_custom_call.1} parent=1 // pred_check
      _
    $region7: #{tpu_custom_call.1} parent=1 // pred_check_branch
      %15 = sbr.rel (0) target = $region9
    $region8: #{tpu_custom_call.1} parent=1 // pred_region
      _
    $region9: #{tpu_custom_call.1} parent=1 // pred_fallthru
      _
    // Predicated region
    $region10: #{tpu_custom_call.1} parent=1 // pred_check
      _
    $region11: #{tpu_custom_call.1} parent=1 // pred_check_branch
      %17 = sbr.rel (0) target = $region13
    $region12: #{tpu_custom_call.1} parent=1 // pred_region
      _
    $region13: #{tpu_custom_call.1} parent=1 // pred_fallthru
      _
    // Predicated region
    $region14: #{tpu_custom_call.1} parent=1 // pred_check
      _
    $region15: #{tpu_custom_call.1} parent=1 // pred_check_branch
      %19 = sbr.rel (0) target = $region17
    $region16: #{tpu_custom_call.1} parent=1 // pred_region
      _
    $region17: #{tpu_custom_call.1} parent=1 // pred_fallthru
      _
    %v20 = vld [vmem:[%s0] sm:$0xff]
    %v21 = vld [vmem:[%s0 + $0x8] sm:$0xff]
    %v22 = vld [vmem:[%s0 + $0x10] sm:$0xff]
    %v23 = vld [vmem:[%s0 + $0x18] sm:$0xff]
    %v24 = vld [vmem:[%s0 + $0x20] sm:$0xff]
    %v25 = vld [vmem:[%s0 + $0x28] sm:$0xff]
    %v26 = vld [vmem:[%s0 + $0x30] sm:$0xff]
    %v27 = vld [vmem:[%s0 + $0x38] sm:$0xff]
    %v28 = vld [vmem:[%s0 + $0x40] sm:$0xff]
    %v29 = vld [vmem:[%s0 + $0x48] sm:$0xff]
    %v30 = vld [vmem:[%s0 + $0x50] sm:$0xff]
    %v31 = vld [vmem:[%s0 + $0x58] sm:$0xff]
    %v32 = vld [vmem:[%s0 + $0x60] sm:$0xff]
    %v33 = vld [vmem:[%s0 + $0x68] sm:$0xff]
    %v34 = vld [vmem:[%s0 + $0x70] sm:$0xff]
    %v35 = vld [vmem:[%s0 + $0x78] sm:$0xff]
    %v36 = vld [vmem:[%s0 + $0x80] sm:$0xff]
    %v37 = vld [vmem:[%s0 + $0x88] sm:$0xff]
    %v38 = vld [vmem:[%s0 + $0x90] sm:$0xff]
    %v39 = vld [vmem:[%s0 + $0x98] sm:$0xff]
    %v40 = vld [vmem:[%s0 + $0xa0] sm:$0xff]
    %v41 = vld [vmem:[%s0 + $0xa8] sm:$0xff]
    %v42 = vld [vmem:[%s0 + $0xb0] sm:$0xff]
    %v43 = vld [vmem:[%s0 + $0xb8] sm:$0xff]
    %v44 = vld [vmem:[%s0 + $0xc0] sm:$0xff]
    %v45 = vld [vmem:[%s0 + $0xc8] sm:$0xff]
    %v46 = vld [vmem:[%s0 + $0xd0] sm:$0xff]
    %v47 = vld [vmem:[%s0 + $0xd8] sm:$0xff]
    %v48 = vld [vmem:[%s0 + $0xe0] sm:$0xff]
    %v49 = vld [vmem:[%s0 + $0xe8] sm:$0xff]
    %v50 = vld [vmem:[%s0 + $0xf0] sm:$0xff]
    %v51 = vld [vmem:[%s0 + $0xf8] sm:$0xff]
    %v52 = vld [vmem:[%s1] sm:$0xff]
    %v53 = vld [vmem:[%s1 + $0x8] sm:$0xff]
    %v54 = vld [vmem:[%s1 + $0x10] sm:$0xff]
    %v55 = vld [vmem:[%s1 + $0x18] sm:$0xff]
    %v56 = vld [vmem:[%s1 + $0x20] sm:$0xff]
    %v57 = vld [vmem:[%s1 + $0x28] sm:$0xff]
    %v58 = vld [vmem:[%s1 + $0x30] sm:$0xff]
    %v59 = vld [vmem:[%s1 + $0x38] sm:$0xff]
    %v60 = vld [vmem:[%s1 + $0x40] sm:$0xff]
    %v61 = vld [vmem:[%s1 + $0x48] sm:$0xff]
    %v62 = vld [vmem:[%s1 + $0x50] sm:$0xff]
    %v63 = vld [vmem:[%s1 + $0x58] sm:$0xff]
    %v64 = vld [vmem:[%s1 + $0x60] sm:$0xff]
    %v65 = vld [vmem:[%s1 + $0x68] sm:$0xff]
    %v66 = vld [vmem:[%s1 + $0x70] sm:$0xff]
    %v67 = vld [vmem:[%s1 + $0x78] sm:$0xff]
    %v68 = vld [vmem:[%s1 + $0x80] sm:$0xff]
    %v69 = vld [vmem:[%s1 + $0x88] sm:$0xff]
    %v70 = vld [vmem:[%s1 + $0x90] sm:$0xff]
    %v71 = vld [vmem:[%s1 + $0x98] sm:$0xff]
    %v72 = vld [vmem:[%s1 + $0xa0] sm:$0xff]
    %v73 = vld [vmem:[%s1 + $0xa8] sm:$0xff]
    %v74 = vld [vmem:[%s1 + $0xb0] sm:$0xff]
    %v75 = vld [vmem:[%s1 + $0xb8] sm:$0xff]
    %v76 = vld [vmem:[%s1 + $0xc0] sm:$0xff]
    %v77 = vld [vmem:[%s1 + $0xc8] sm:$0xff]
    %v78 = vld [vmem:[%s1 + $0xd0] sm:$0xff]
    %v79 = vld [vmem:[%s1 + $0xd8] sm:$0xff]
    %v80 = vld [vmem:[%s1 + $0xe0] sm:$0xff]
    %v81 = vld [vmem:[%s1 + $0xe8] sm:$0xff]
    %v82 = vld [vmem:[%s1 + $0xf0] sm:$0xff]
    %v83 = vld [vmem:[%s1 + $0xf8] sm:$0xff]
    %v84 = vld [vmem:[%s2] sm:$0xff]
    %v85 = vld [vmem:[%s2 + $0x8] sm:$0xff]
    %v86 = vld [vmem:[%s2 + $0x10] sm:$0xff]
    %v87 = vld [vmem:[%s2 + $0x18] sm:$0xff]
    %v88 = vld [vmem:[%s2 + $0x20] sm:$0xff]
    %v89 = vld [vmem:[%s2 + $0x28] sm:$0xff]
    %v90 = vld [vmem:[%s2 + $0x30] sm:$0xff]
    %v91 = vld [vmem:[%s2 + $0x38] sm:$0xff]
    %v92 = vld [vmem:[%s2 + $0x40] sm:$0xff]
    %v93 = vld [vmem:[%s2 + $0x48] sm:$0xff]
    %v94 = vld [vmem:[%s2 + $0x50] sm:$0xff]
    %v95 = vld [vmem:[%s2 + $0x58] sm:$0xff]
    %v96 = vld [vmem:[%s2 + $0x60] sm:$0xff]
    %v97 = vld [vmem:[%s2 + $0x68] sm:$0xff]
    %v98 = vld [vmem:[%s2 + $0x70] sm:$0xff]
    %v99 = vld [vmem:[%s2 + $0x78] sm:$0xff]
    %v100 = vld [vmem:[%s2 + $0x80] sm:$0xff]
    %v101 = vld [vmem:[%s2 + $0x88] sm:$0xff]
    %v102 = vld [vmem:[%s2 + $0x90] sm:$0xff]
    %v103 = vld [vmem:[%s2 + $0x98] sm:$0xff]
    %v104 = vld [vmem:[%s2 + $0xa0] sm:$0xff]
    %v105 = vld [vmem:[%s2 + $0xa8] sm:$0xff]
    %v106 = vld [vmem:[%s2 + $0xb0] sm:$0xff]
    %v107 = vld [vmem:[%s2 + $0xb8] sm:$0xff]
    %v108 = vld [vmem:[%s2 + $0xc0] sm:$0xff]
    %v109 = vld [vmem:[%s2 + $0xc8] sm:$0xff]
    %v110 = vld [vmem:[%s2 + $0xd0] sm:$0xff]
    %v111 = vld [vmem:[%s2 + $0xd8] sm:$0xff]
    %v112 = vld [vmem:[%s2 + $0xe0] sm:$0xff]
    %v113 = vld [vmem:[%s2 + $0xe8] sm:$0xff]
    %v114 = vld [vmem:[%s2 + $0xf0] sm:$0xff]
    %v115 = vld [vmem:[%s2 + $0xf8] sm:$0xff]
    %v116 = vld [vmem:[%s3] sm:$0xff]
    %v117 = vld [vmem:[%s3 + $0x8] sm:$0xff]
    %v118 = vld [vmem:[%s3 + $0x10] sm:$0xff]
    %v119 = vld [vmem:[%s3 + $0x18] sm:$0xff]
    %vm120 = vcmask 261120
    %v122 = vsel %vm120, %v20, 0
    %v125 = vsel %vm120, %v21, 0
    %v128 = vsel %vm120, %v22, 0
    %v131 = vsel %vm120, %v23, 0
    %v134 = vsel %vm120, %v24, 0
    %v137 = vsel %vm120, %v25, 0
    %v140 = vsel %vm120, %v26, 0
    %v143 = vsel %vm120, %v27, 0
    %v146 = vsel %vm120, %v28, 0
    %v149 = vsel %vm120, %v29, 0
    %v152 = vsel %vm120, %v30, 0
    %v155 = vsel %vm120, %v31, 0
    %v158 = vsel %vm120, %v32, 0
    %v161 = vsel %vm120, %v33, 0
    %v164 = vsel %vm120, %v34, 0
    %v167 = vsel %vm120, %v35, 0
    %v170 = vsel %vm120, %v36, 0
    %v173 = vsel %vm120, %v37, 0
    %v176 = vsel %vm120, %v38, 0
    %v179 = vsel %vm120, %v39, 0
    %v182 = vsel %vm120, %v40, 0
    %v185 = vsel %vm120, %v41, 0
    %v188 = vsel %vm120, %v42, 0
    %v191 = vsel %vm120, %v43, 0
    %v194 = vsel %vm120, %v44, 0
    %v197 = vsel %vm120, %v45, 0
    %v200 = vsel %vm120, %v46, 0
    %v203 = vsel %vm120, %v47, 0
    %v206 = vsel %vm120, %v48, 0
    %v209 = vsel %vm120, %v49, 0
    %v212 = vsel %vm120, %v50, 0
    %v215 = vsel %vm120, %v51, 0
    %217 = vmatprep.subr.mxu0 0.0
    %218 = vmatpush1.msra.mxu0 %v116
    %219 = vmatprep.subr.mxu0 0.0
    %220 = vmatpush1.msra.mxu0 %v117
    %221 = vmatprep.subr.mxu0 0.0
    %222 = vmatpush1.msra.mxu0 %v118
    %223 = vmatprep.subr.mxu0 0.0
    %224 = vmatpush1.msra.mxu0 %v119
    %225 = vmatprep.subr.mxu0 0.0
    %226 = vmatpush1.msra.mxu0 0.0
    %227 = vmatprep.subr.mxu0 0.0
    %228 = vmatpush1.msra.mxu0 0.0
    %229 = vmatprep.subr.mxu0 0.0
    %230 = vmatpush1.msra.mxu0 0.0
    %231 = vmatprep.subr.mxu0 0.0
    %232 = vmatpush1.msra.mxu0 0.0
    %233 = vmatprep.subr.mxu0 0.0
    %234 = vmatpush1.msra.mxu0 0.0
    %235 = vmatprep.subr.mxu0 0.0
    %236 = vmatpush1.msra.mxu0 0.0
    %237 = vmatprep.subr.mxu0 0.0
    %238 = vmatpush1.msra.mxu0 0.0
    %239 = vmatprep.subr.mxu0 0.0
    %240 = vmatpush1.msra.mxu0 0.0
    %241 = vmatprep.subr.mxu0 0.0
    %242 = vmatpush1.msra.mxu0 0.0
    %243 = vmatprep.subr.mxu0 0.0
    %244 = vmatpush1.msra.mxu0 0.0
    %245 = vmatprep.subr.mxu0 0.0
    %246 = vmatpush1.msra.mxu0 0.0
    %247 = vmatprep.subr.mxu0 0.0
    %248 = vmatpush1.msra.mxu0 0.0
    %249 = vmatprep.subr.mxu0 0.0
    %250 = vmatpush1.msra.mxu0 0.0
    %251 = vmatprep.subr.mxu0 0.0
    %252 = vmatpush1.msra.mxu0 0.0
    %253 = vmatprep.subr.mxu0 0.0
    %254 = vmatpush1.msra.mxu0 0.0
    %255 = vmatprep.subr.mxu0 0.0
    %256 = vmatpush1.msra.mxu0 0.0
    %257 = vmatprep.subr.mxu0 0.0
    %258 = vmatpush1.msra.mxu0 0.0
    %259 = vmatprep.subr.mxu0 0.0
    %260 = vmatpush1.msra.mxu0 0.0
    %261 = vmatprep.subr.mxu0 0.0
    %262 = vmatpush1.msra.mxu0 0.0
    %263 = vmatprep.subr.mxu0 0.0
    %264 = vmatpush1.msra.mxu0 0.0
    %265 = vmatprep.subr.mxu0 0.0
    %266 = vmatpush1.msra.mxu0 0.0
    %267 = vmatprep.subr.mxu0 0.0
    %268 = vmatpush1.msra.mxu0 0.0
    %269 = vmatprep.subr.mxu0 0.0
    %270 = vmatpush1.msra.mxu0 0.0
    %271 = vmatprep.subr.mxu0 0.0
    %272 = vmatpush1.msra.mxu0 0.0
    %273 = vmatprep.subr.mxu0 0.0
    %274 = vmatpush1.msra.mxu0 0.0
    %275 = vmatprep.subr.mxu0 0.0
    %276 = vmatpush1.msra.mxu0 0.0
    %277 = vmatprep.subr.mxu0 0.0
    %278 = vmatpush1.msra.mxu0 0.0
    %279 = vmatprep.subr.mxu0 0.0
    %280 = vmatpush1.msra.mxu0 0.0
    %281 = vmatprep.mubr.f32.mxu0 0.0
    %282 = vmatmul.mubr.f32.gmra.mrb[0].mxu0 %v122
    %v283 = vpop.f32.mrb[0].mxu0
    %v284 = vadd.f32 0.0, %v283
    %v285 = vpop.f32.mrb[0].mxu0
    %286 = vmatprep.mubr.f32.mxu0 0.0
    %287 = vmatmul.mubr.f32.gmra.mrb[0].mxu0 %v125
    %v288 = vpop.f32.mrb[0].mxu0
    %v289 = vadd.f32 0.0, %v288
    %v290 = vpop.f32.mrb[0].mxu0
    %291 = vmatprep.mubr.f32.mxu0 0.0
    %292 = vmatmul.mubr.f32.gmra.mrb[0].mxu0 %v128
    %v293 = vpop.f32.mrb[0].mxu0
    %v294 = vadd.f32 0.0, %v293
    %v295 = vpop.f32.mrb[0].mxu0
    %296 = vmatprep.mubr.f32.mxu0 0.0
    %297 = vmatmul.mubr.f32.gmra.mrb[0].mxu0 %v131
    %v298 = vpop.f32.mrb[0].mxu0
    %v299 = vadd.f32 0.0, %v298
    %v300 = vpop.f32.mrb[0].mxu0
    %301 = vmatprep.mubr.f32.mxu0 0.0
    %302 = vmatmul.mubr.f32.gmra.mrb[0].mxu0 %v134
    %v303 = vpop.f32.mrb[0].mxu0
    %v304 = vadd.f32 0.0, %v303
    %v305 = vpop.f32.mrb[0].mxu0
    %306 = vmatprep.mubr.f32.mxu0 0.0
    %307 = vmatmul.mubr.f32.gmra.mrb[0].mxu0 %v137
    %v308 = vpop.f32.mrb[0].mxu0
    %v309 = vadd.f32 0.0, %v308
    %v310 = vpop.f32.mrb[0].mxu0
    %311 = vmatprep.mubr.f32.mxu0 0.0
    %312 = vmatmul.mubr.f32.gmra.mrb[0].mxu0 %v140
    %v313 = vpop.f32.mrb[0].mxu0
    %v314 = vadd.f32 0.0, %v313
    %v315 = vpop.f32.mrb[0].mxu0
    %316 = vmatprep.mubr.f32.mxu0 0.0
    %317 = vmatmul.mubr.f32.gmra.mrb[0].mxu0 %v143
    %v318 = vpop.f32.mrb[0].mxu0
    %v319 = vadd.f32 0.0, %v318
    %v320 = vpop.f32.mrb[0].mxu0
    %321 = vmatprep.mubr.f32.mxu0 0.0
    %322 = vmatmul.mubr.f32.gmra.mrb[0].mxu0 %v146
    %v323 = vpop.f32.mrb[0].mxu0
    %v324 = vadd.f32 0.0, %v323
    %v325 = vpop.f32.mrb[0].mxu0
    %326 = vmatprep.mubr.f32.mxu0 0.0
    %327 = vmatmul.mubr.f32.gmra.mrb[0].mxu0 %v149
    %v328 = vpop.f32.mrb[0].mxu0
    %v329 = vadd.f32 0.0, %v328
    %v330 = vpop.f32.mrb[0].mxu0
    %331 = vmatprep.mubr.f32.mxu0 0.0
    %332 = vmatmul.mubr.f32.gmra.mrb[0].mxu0 %v152
    %v333 = vpop.f32.mrb[0].mxu0
    %v334 = vadd.f32 0.0, %v333
    %v335 = vpop.f32.mrb[0].mxu0
    %336 = vmatprep.mubr.f32.mxu0 0.0
    %337 = vmatmul.mubr.f32.gmra.mrb[0].mxu0 %v155
    %v338 = vpop.f32.mrb[0].mxu0
    %v339 = vadd.f32 0.0, %v338
    %v340 = vpop.f32.mrb[0].mxu0
    %341 = vmatprep.mubr.f32.mxu0 0.0
    %342 = vmatmul.mubr.f32.gmra.mrb[0].mxu0 %v158
    %v343 = vpop.f32.mrb[0].mxu0
    %v344 = vadd.f32 0.0, %v343
    %v345 = vpop.f32.mrb[0].mxu0
    %346 = vmatprep.mubr.f32.mxu0 0.0
    %347 = vmatmul.mubr.f32.gmra.mrb[0].mxu0 %v161
    %v348 = vpop.f32.mrb[0].mxu0
    %v349 = vadd.f32 0.0, %v348
    %v350 = vpop.f32.mrb[0].mxu0
    %351 = vmatprep.mubr.f32.mxu0 0.0
    %352 = vmatmul.mubr.f32.gmra.mrb[0].mxu0 %v164
    %v353 = vpop.f32.mrb[0].mxu0
    %v354 = vadd.f32 0.0, %v353
    %v355 = vpop.f32.mrb[0].mxu0
    %356 = vmatprep.mubr.f32.mxu0 0.0
    %357 = vmatmul.mubr.f32.gmra.mrb[0].mxu0 %v167
    %v358 = vpop.f32.mrb[0].mxu0
    %v359 = vadd.f32 0.0, %v358
    %v360 = vpop.f32.mrb[0].mxu0
    %361 = vmatprep.mubr.f32.mxu0 0.0
    %362 = vmatmul.mubr.f32.gmra.mrb[0].mxu0 %v170
    %v363 = vpop.f32.mrb[0].mxu0
    %v364 = vadd.f32 0.0, %v363
    %v365 = vpop.f32.mrb[0].mxu0
    %366 = vmatprep.mubr.f32.mxu0 0.0
    %367 = vmatmul.mubr.f32.gmra.mrb[0].mxu0 %v173
    %v368 = vpop.f32.mrb[0].mxu0
    %v369 = vadd.f32 0.0, %v368
    %v370 = vpop.f32.mrb[0].mxu0
    %371 = vmatprep.mubr.f32.mxu0 0.0
    %372 = vmatmul.mubr.f32.gmra.mrb[0].mxu0 %v176
    %v373 = vpop.f32.mrb[0].mxu0
    %v374 = vadd.f32 0.0, %v373
    %v375 = vpop.f32.mrb[0].mxu0
    %376 = vmatprep.mubr.f32.mxu0 0.0
    %377 = vmatmul.mubr.f32.gmra.mrb[0].mxu0 %v179
    %v378 = vpop.f32.mrb[0].mxu0
    %v379 = vadd.f32 0.0, %v378
    %v380 = vpop.f32.mrb[0].mxu0
    %381 = vmatprep.mubr.f32.mxu0 0.0
    %382 = vmatmul.mubr.f32.gmra.mrb[0].mxu0 %v182
    %v383 = vpop.f32.mrb[0].mxu0
    %v384 = vadd.f32 0.0, %v383
    %v385 = vpop.f32.mrb[0].mxu0
    %386 = vmatprep.mubr.f32.mxu0 0.0
    %387 = vmatmul.mubr.f32.gmra.mrb[0].mxu0 %v185
    %v388 = vpop.f32.mrb[0].mxu0
    %v389 = vadd.f32 0.0, %v388
    %v390 = vpop.f32.mrb[0].mxu0
    %391 = vmatprep.mubr.f32.mxu0 0.0
    %392 = vmatmul.mubr.f32.gmra.mrb[0].mxu0 %v188
    %v393 = vpop.f32.mrb[0].mxu0
    %v394 = vadd.f32 0.0, %v393
    %v395 = vpop.f32.mrb[0].mxu0
    %396 = vmatprep.mubr.f32.mxu0 0.0
    %397 = vmatmul.mubr.f32.gmra.mrb[0].mxu0 %v191
    %v398 = vpop.f32.mrb[0].mxu0
    %v399 = vadd.f32 0.0, %v398
    %v400 = vpop.f32.mrb[0].mxu0
    %401 = vmatprep.mubr.f32.mxu0 0.0
    %402 = vmatmul.mubr.f32.gmra.mrb[0].mxu0 %v194
    %v403 = vpop.f32.mrb[0].mxu0
    %v404 = vadd.f32 0.0, %v403
    %v405 = vpop.f32.mrb[0].mxu0
    %406 = vmatprep.mubr.f32.mxu0 0.0
    %407 = vmatmul.mubr.f32.gmra.mrb[0].mxu0 %v197
    %v408 = vpop.f32.mrb[0].mxu0
    %v409 = vadd.f32 0.0, %v408
    %v410 = vpop.f32.mrb[0].mxu0
    %411 = vmatprep.mubr.f32.mxu0 0.0
    %412 = vmatmul.mubr.f32.gmra.mrb[0].mxu0 %v200
    %v413 = vpop.f32.mrb[0].mxu0
    %v414 = vadd.f32 0.0, %v413
    %v415 = vpop.f32.mrb[0].mxu0
    %416 = vmatprep.mubr.f32.mxu0 0.0
    %417 = vmatmul.mubr.f32.gmra.mrb[0].mxu0 %v203
    %v418 = vpop.f32.mrb[0].mxu0
    %v419 = vadd.f32 0.0, %v418
    %v420 = vpop.f32.mrb[0].mxu0
    %421 = vmatprep.mubr.f32.mxu0 0.0
    %422 = vmatmul.mubr.f32.gmra.mrb[0].mxu0 %v206
    %v423 = vpop.f32.mrb[0].mxu0
    %v424 = vadd.f32 0.0, %v423
    %v425 = vpop.f32.mrb[0].mxu0
    %426 = vmatprep.mubr.f32.mxu0 0.0
    %427 = vmatmul.mubr.f32.gmra.mrb[0].mxu0 %v209
    %v428 = vpop.f32.mrb[0].mxu0
    %v429 = vadd.f32 0.0, %v428
    %v430 = vpop.f32.mrb[0].mxu0
    %431 = vmatprep.mubr.f32.mxu0 0.0
    %432 = vmatmul.mubr.f32.gmra.mrb[0].mxu0 %v212
    %v433 = vpop.f32.mrb[0].mxu0
    %v434 = vadd.f32 0.0, %v433
    %v435 = vpop.f32.mrb[0].mxu0
    %436 = vmatprep.mubr.f32.mxu0 0.0
    %437 = vmatmul.mubr.f32.gmra.mrb[0].mxu0 %v215
    %v438 = vpop.f32.mrb[0].mxu0
    %v439 = vadd.f32 0.0, %v438
    %v440 = vpop.f32.mrb[0].mxu0
    %441 = vdwg.mxu0
    %vm442 = vcmask 130048
    %v444 = vsel %vm442, %v284, 0
    %v447 = vsel %vm442, %v289, 0
    %v450 = vsel %vm442, %v294, 0
    %v453 = vsel %vm442, %v299, 0
    %v456 = vsel %vm442, %v304, 0
    %v459 = vsel %vm442, %v309, 0
    %v462 = vsel %vm442, %v314, 0
    %v465 = vsel %vm442, %v319, 0
    %v468 = vsel %vm442, %v324, 0
    %v471 = vsel %vm442, %v329, 0
    %v474 = vsel %vm442, %v334, 0
    %v477 = vsel %vm442, %v339, 0
    %v480 = vsel %vm442, %v344, 0
    %v483 = vsel %vm442, %v349, 0
    %v486 = vsel %vm442, %v354, 0
    %v489 = vsel %vm442, %v359, 0
    %v492 = vsel %vm442, %v52, 0
    %v495 = vsel %vm442, %v53, 0
    %v498 = vsel %vm442, %v54, 0
    %v501 = vsel %vm442, %v55, 0
    %v504 = vsel %vm442, %v56, 0
    %v507 = vsel %vm442, %v57, 0
    %v510 = vsel %vm442, %v58, 0
    %v513 = vsel %vm442, %v59, 0
    %v516 = vsel %vm442, %v60, 0
    %v519 = vsel %vm442, %v61, 0
    %v522 = vsel %vm442, %v62, 0
    %v525 = vsel %vm442, %v63, 0
    %v528 = vsel %vm442, %v64, 0
    %v531 = vsel %vm442, %v65, 0
    %v534 = vsel %vm442, %v66, 0
    %v537 = vsel %vm442, %v67, 0
    %539 = vmatprep.subr.mxu0 0.0
    %540 = vmatpush1.xpose.msra.mxu0 %v492
    %541 = vmatprep.subr.mxu0 0.0
    %542 = vmatpush1.xpose.msra.mxu0 %v495
    %543 = vmatprep.subr.mxu0 0.0
    %544 = vmatpush1.xpose.msra.mxu0 %v498
    %545 = vmatprep.subr.mxu0 0.0
    %546 = vmatpush1.xpose.msra.mxu0 %v501
    %547 = vmatprep.subr.mxu0 0.0
    %548 = vmatpush1.xpose.msra.mxu0 %v504
    %549 = vmatprep.subr.mxu0 0.0
    %550 = vmatpush1.xpose.msra.mxu0 %v507
    %551 = vmatprep.subr.mxu0 0.0
    %552 = vmatpush1.xpose.msra.mxu0 %v510
    %553 = vmatprep.subr.mxu0 0.0
    %554 = vmatpush1.xpose.msra.mxu0 %v513
    %555 = vmatprep.subr.mxu0 0.0
    %556 = vmatpush1.xpose.msra.mxu0 %v516
    %557 = vmatprep.subr.mxu0 0.0
    %558 = vmatpush1.xpose.msra.mxu0 %v519
    %559 = vmatprep.subr.mxu0 0.0
    %560 = vmatpush1.xpose.msra.mxu0 %v522
    %561 = vmatprep.subr.mxu0 0.0
    %562 = vmatpush1.xpose.msra.mxu0 %v525
    %563 = vmatprep.subr.mxu0 0.0
    %564 = vmatpush1.xpose.msra.mxu0 %v528
    %565 = vmatprep.subr.mxu0 0.0
    %566 = vmatpush1.xpose.msra.mxu0 %v531
    %567 = vmatprep.subr.mxu0 0.0
    %568 = vmatpush1.xpose.msra.mxu0 %v534
    %569 = vmatprep.subr.mxu0 0.0
    %570 = vmatpush1.xpose.msra.mxu0 %v537
    %571 = vmatprep.subr.mxu0 0.0
    %572 = vmatpush1.xpose.msra.mxu0 0.0
    %573 = vmatprep.subr.mxu0 0.0
    %574 = vmatpush1.xpose.msra.mxu0 0.0
    %575 = vmatprep.subr.mxu0 0.0
    %576 = vmatpush1.xpose.msra.mxu0 0.0
    %577 = vmatprep.subr.mxu0 0.0
    %578 = vmatpush1.xpose.msra.mxu0 0.0
    %579 = vmatprep.subr.mxu0 0.0
    %580 = vmatpush1.xpose.msra.mxu0 0.0
    %581 = vmatprep.subr.mxu0 0.0
    %582 = vmatpush1.xpose.msra.mxu0 0.0
    %583 = vmatprep.subr.mxu0 0.0
    %584 = vmatpush1.xpose.msra.mxu0 0.0
    %585 = vmatprep.subr.mxu0 0.0
    %586 = vmatpush1.xpose.msra.mxu0 0.0
    %587 = vmatprep.subr.mxu0 0.0
    %588 = vmatpush1.xpose.msra.mxu0 0.0
    %589 = vmatprep.subr.mxu0 0.0
    %590 = vmatpush1.xpose.msra.mxu0 0.0
    %591 = vmatprep.subr.mxu0 0.0
    %592 = vmatpush1.xpose.msra.mxu0 0.0
    %593 = vmatprep.subr.mxu0 0.0
    %594 = vmatpush1.xpose.msra.mxu0 0.0
    %595 = vmatprep.subr.mxu0 0.0
    %596 = vmatpush1.xpose.msra.mxu0 0.0
    %597 = vmatprep.subr.mxu0 0.0
    %598 = vmatpush1.xpose.msra.mxu0 0.0
    %599 = vmatprep.subr.mxu0 0.0
    %600 = vmatpush1.xpose.msra.mxu0 0.0
    %601 = vmatprep.subr.mxu0 0.0
    %602 = vmatpush1.xpose.msra.mxu0 0.0
    %603 = vmatprep.mubr.f32.mxu0 0.0
    %604 = vmatmul.mubr.f32.gmra.mrb[0].mxu0 %v444
    %v605 = vpop.f32.mrb[0].mxu0
    %v606 = vadd.f32 0.0, %v605
    %v607 = vpop.f32.mrb[0].mxu0
    %608 = vmatprep.mubr.f32.mxu0 0.0
    %609 = vmatmul.mubr.f32.gmra.mrb[0].mxu0 %v447
    %v610 = vpop.f32.mrb[0].mxu0
    %v611 = vadd.f32 0.0, %v610
    %v612 = vpop.f32.mrb[0].mxu0
    %613 = vmatprep.mubr.f32.mxu0 0.0
    %614 = vmatmul.mubr.f32.gmra.mrb[0].mxu0 %v450
    %v615 = vpop.f32.mrb[0].mxu0
    %v616 = vadd.f32 0.0, %v615
    %v617 = vpop.f32.mrb[0].mxu0
    %618 = vmatprep.mubr.f32.mxu0 0.0
    %619 = vmatmul.mubr.f32.gmra.mrb[0].mxu0 %v453
    %v620 = vpop.f32.mrb[0].mxu0
    %v621 = vadd.f32 0.0, %v620
    %v622 = vpop.f32.mrb[0].mxu0
    %623 = vmatprep.mubr.f32.mxu0 0.0
    %624 = vmatmul.mubr.f32.gmra.mrb[0].mxu0 %v456
    %v625 = vpop.f32.mrb[0].mxu0
    %v626 = vadd.f32 0.0, %v625
    %v627 = vpop.f32.mrb[0].mxu0
    %628 = vmatprep.mubr.f32.mxu0 0.0
    %629 = vmatmul.mubr.f32.gmra.mrb[0].mxu0 %v459
    %v630 = vpop.f32.mrb[0].mxu0
    %v631 = vadd.f32 0.0, %v630
    %v632 = vpop.f32.mrb[0].mxu0
    %633 = vmatprep.mubr.f32.mxu0 0.0
    %634 = vmatmul.mubr.f32.gmra.mrb[0].mxu0 %v462
    %v635 = vpop.f32.mrb[0].mxu0
    %v636 = vadd.f32 0.0, %v635
    %v637 = vpop.f32.mrb[0].mxu0
    %638 = vmatprep.mubr.f32.mxu0 0.0
    %639 = vmatmul.mubr.f32.gmra.mrb[0].mxu0 %v465
    %v640 = vpop.f32.mrb[0].mxu0
    %v641 = vadd.f32 0.0, %v640
    %v642 = vpop.f32.mrb[0].mxu0
    %643 = vmatprep.mubr.f32.mxu0 0.0
    %644 = vmatmul.mubr.f32.gmra.mrb[0].mxu0 %v468
    %v645 = vpop.f32.mrb[0].mxu0
    %v646 = vadd.f32 0.0, %v645
    %v647 = vpop.f32.mrb[0].mxu0
    %648 = vmatprep.mubr.f32.mxu0 0.0
    %649 = vmatmul.mubr.f32.gmra.mrb[0].mxu0 %v471
    %v650 = vpop.f32.mrb[0].mxu0
    %v651 = vadd.f32 0.0, %v650
    %v652 = vpop.f32.mrb[0].mxu0
    %653 = vmatprep.mubr.f32.mxu0 0.0
    %654 = vmatmul.mubr.f32.gmra.mrb[0].mxu0 %v474
    %v655 = vpop.f32.mrb[0].mxu0
    %v656 = vadd.f32 0.0, %v655
    %v657 = vpop.f32.mrb[0].mxu0
    %658 = vmatprep.mubr.f32.mxu0 0.0
    %659 = vmatmul.mubr.f32.gmra.mrb[0].mxu0 %v477
    %v660 = vpop.f32.mrb[0].mxu0
    %v661 = vadd.f32 0.0, %v660
    %v662 = vpop.f32.mrb[0].mxu0
    %663 = vmatprep.mubr.f32.mxu0 0.0
    %664 = vmatmul.mubr.f32.gmra.mrb[0].mxu0 %v480
    %v665 = vpop.f32.mrb[0].mxu0
    %v666 = vadd.f32 0.0, %v665
    %v667 = vpop.f32.mrb[0].mxu0
    %668 = vmatprep.mubr.f32.mxu0 0.0
    %669 = vmatmul.mubr.f32.gmra.mrb[0].mxu0 %v483
    %v670 = vpop.f32.mrb[0].mxu0
    %v671 = vadd.f32 0.0, %v670
    %v672 = vpop.f32.mrb[0].mxu0
    %673 = vmatprep.mubr.f32.mxu0 0.0
    %674 = vmatmul.mubr.f32.gmra.mrb[0].mxu0 %v486
    %v675 = vpop.f32.mrb[0].mxu0
    %v676 = vadd.f32 0.0, %v675
    %v677 = vpop.f32.mrb[0].mxu0
    %678 = vmatprep.mubr.f32.mxu0 0.0
    %679 = vmatmul.mubr.f32.gmra.mrb[0].mxu0 %v489
    %v680 = vpop.f32.mrb[0].mxu0
    %v681 = vadd.f32 0.0, %v680
    %v682 = vpop.f32.mrb[0].mxu0
    %683 = vdwg.mxu0
    %v685 = vsel %vm442, %v364, 0
    %v688 = vsel %vm442, %v369, 0
    %v691 = vsel %vm442, %v374, 0
    %v694 = vsel %vm442, %v379, 0
    %v697 = vsel %vm442, %v384, 0
    %v700 = vsel %vm442, %v389, 0
    %v703 = vsel %vm442, %v394, 0
    %v706 = vsel %vm442, %v399, 0
    %v709 = vsel %vm442, %v404, 0
    %v712 = vsel %vm442, %v409, 0
    %v715 = vsel %vm442, %v414, 0
    %v718 = vsel %vm442, %v419, 0
    %v721 = vsel %vm442, %v424, 0
    %v724 = vsel %vm442, %v429, 0
    %v727 = vsel %vm442, %v434, 0
    %v730 = vsel %vm442, %v439, 0
    %v733 = vsel %vm442, %v68, 0
    %v736 = vsel %vm442, %v69, 0
    %v739 = vsel %vm442, %v70, 0
    %v742 = vsel %vm442, %v71, 0
    %v745 = vsel %vm442, %v72, 0
    %v748 = vsel %vm442, %v73, 0
    %v751 = vsel %vm442, %v74, 0
    %v754 = vsel %vm442, %v75, 0
    %v757 = vsel %vm442, %v76, 0
    %v760 = vsel %vm442, %v77, 0
    %v763 = vsel %vm442, %v78, 0
    %v766 = vsel %vm442, %v79, 0
    %v769 = vsel %vm442, %v80, 0
    %v772 = vsel %vm442, %v81, 0
    %v775 = vsel %vm442, %v82, 0
    %v778 = vsel %vm442, %v83, 0
    %780 = vmatprep.subr.mxu0 0.0
    %781 = vmatpush1.xpose.msra.mxu0 %v733
    %782 = vmatprep.subr.mxu0 0.0
    %783 = vmatpush1.xpose.msra.mxu0 %v736
    %784 = vmatprep.subr.mxu0 0.0
    %785 = vmatpush1.xpose.msra.mxu0 %v739
    %786 = vmatprep.subr.mxu0 0.0
    %787 = vmatpush1.xpose.msra.mxu0 %v742
    %788 = vmatprep.subr.mxu0 0.0
    %789 = vmatpush1.xpose.msra.mxu0 %v745
    %790 = vmatprep.subr.mxu0 0.0
    %791 = vmatpush1.xpose.msra.mxu0 %v748
    %792 = vmatprep.subr.mxu0 0.0
    %793 = vmatpush1.xpose.msra.mxu0 %v751
    %794 = vmatprep.subr.mxu0 0.0
    %795 = vmatpush1.xpose.msra.mxu0 %v754
    %796 = vmatprep.subr.mxu0 0.0
    %797 = vmatpush1.xpose.msra.mxu0 %v757
    %798 = vmatprep.subr.mxu0 0.0
    %799 = vmatpush1.xpose.msra.mxu0 %v760
    %800 = vmatprep.subr.mxu0 0.0
    %801 = vmatpush1.xpose.msra.mxu0 %v763
    %802 = vmatprep.subr.mxu0 0.0
    %803 = vmatpush1.xpose.msra.mxu0 %v766
    %804 = vmatprep.subr.mxu0 0.0
    %805 = vmatpush1.xpose.msra.mxu0 %v769
    %806 = vmatprep.subr.mxu0 0.0
    %807 = vmatpush1.xpose.msra.mxu0 %v772
    %808 = vmatprep.subr.mxu0 0.0
    %809 = vmatpush1.xpose.msra.mxu0 %v775
    %810 = vmatprep.subr.mxu0 0.0
    %811 = vmatpush1.xpose.msra.mxu0 %v778
    %812 = vmatprep.subr.mxu0 0.0
    %813 = vmatpush1.xpose.msra.mxu0 0.0
    %814 = vmatprep.subr.mxu0 0.0
    %815 = vmatpush1.xpose.msra.mxu0 0.0
    %816 = vmatprep.subr.mxu0 0.0
    %817 = vmatpush1.xpose.msra.mxu0 0.0
    %818 = vmatprep.subr.mxu0 0.0
    %819 = vmatpush1.xpose.msra.mxu0 0.0
    %820 = vmatprep.subr.mxu0 0.0
    %821 = vmatpush1.xpose.msra.mxu0 0.0
    %822 = vmatprep.subr.mxu0 0.0
    %823 = vmatpush1.xpose.msra.mxu0 0.0
    %824 = vmatprep.subr.mxu0 0.0
    %825 = vmatpush1.xpose.msra.mxu0 0.0
    %826 = vmatprep.subr.mxu0 0.0
    %827 = vmatpush1.xpose.msra.mxu0 0.0
    %828 = vmatprep.subr.mxu0 0.0
    %829 = vmatpush1.xpose.msra.mxu0 0.0
    %830 = vmatprep.subr.mxu0 0.0
    %831 = vmatpush1.xpose.msra.mxu0 0.0
    %832 = vmatprep.subr.mxu0 0.0
    %833 = vmatpush1.xpose.msra.mxu0 0.0
    %834 = vmatprep.subr.mxu0 0.0
    %835 = vmatpush1.xpose.msra.mxu0 0.0
    %836 = vmatprep.subr.mxu0 0.0
    %837 = vmatpush1.xpose.msra.mxu0 0.0
    %838 = vmatprep.subr.mxu0 0.0
    %839 = vmatpush1.xpose.msra.mxu0 0.0
    %840 = vmatprep.subr.mxu0 0.0
    %841 = vmatpush1.xpose.msra.mxu0 0.0
    %842 = vmatprep.subr.mxu0 0.0
    %843 = vmatpush1.xpose.msra.mxu0 0.0
    %844 = vmatprep.mubr.f32.mxu0 0.0
    %845 = vmatmul.mubr.f32.gmra.mrb[0].mxu0 %v685
    %v846 = vpop.f32.mrb[0].mxu0
    %v847 = vadd.f32 0.0, %v846
    %v848 = vpop.f32.mrb[0].mxu0
    %849 = vmatprep.mubr.f32.mxu0 0.0
    %850 = vmatmul.mubr.f32.gmra.mrb[0].mxu0 %v688
    %v851 = vpop.f32.mrb[0].mxu0
    %v852 = vadd.f32 0.0, %v851
    %v853 = vpop.f32.mrb[0].mxu0
    %854 = vmatprep.mubr.f32.mxu0 0.0
    %855 = vmatmul.mubr.f32.gmra.mrb[0].mxu0 %v691
    %v856 = vpop.f32.mrb[0].mxu0
    %v857 = vadd.f32 0.0, %v856
    %v858 = vpop.f32.mrb[0].mxu0
    %859 = vmatprep.mubr.f32.mxu0 0.0
    %860 = vmatmul.mubr.f32.gmra.mrb[0].mxu0 %v694
    %v861 = vpop.f32.mrb[0].mxu0
    %v862 = vadd.f32 0.0, %v861
    %v863 = vpop.f32.mrb[0].mxu0
    %864 = vmatprep.mubr.f32.mxu0 0.0
    %865 = vmatmul.mubr.f32.gmra.mrb[0].mxu0 %v697
    %v866 = vpop.f32.mrb[0].mxu0
    %v867 = vadd.f32 0.0, %v866
    %v868 = vpop.f32.mrb[0].mxu0
    %869 = vmatprep.mubr.f32.mxu0 0.0
    %870 = vmatmul.mubr.f32.gmra.mrb[0].mxu0 %v700
    %v871 = vpop.f32.mrb[0].mxu0
    %v872 = vadd.f32 0.0, %v871
    %v873 = vpop.f32.mrb[0].mxu0
    %874 = vmatprep.mubr.f32.mxu0 0.0
    %875 = vmatmul.mubr.f32.gmra.mrb[0].mxu0 %v703
    %v876 = vpop.f32.mrb[0].mxu0
    %v877 = vadd.f32 0.0, %v876
    %v878 = vpop.f32.mrb[0].mxu0
    %879 = vmatprep.mubr.f32.mxu0 0.0
    %880 = vmatmul.mubr.f32.gmra.mrb[0].mxu0 %v706
    %v881 = vpop.f32.mrb[0].mxu0
    %v882 = vadd.f32 0.0, %v881
    %v883 = vpop.f32.mrb[0].mxu0
    %884 = vmatprep.mubr.f32.mxu0 0.0
    %885 = vmatmul.mubr.f32.gmra.mrb[0].mxu0 %v709
    %v886 = vpop.f32.mrb[0].mxu0
    %v887 = vadd.f32 0.0, %v886
    %v888 = vpop.f32.mrb[0].mxu0
    %889 = vmatprep.mubr.f32.mxu0 0.0
    %890 = vmatmul.mubr.f32.gmra.mrb[0].mxu0 %v712
    %v891 = vpop.f32.mrb[0].mxu0
    %v892 = vadd.f32 0.0, %v891
    %v893 = vpop.f32.mrb[0].mxu0
    %894 = vmatprep.mubr.f32.mxu0 0.0
    %895 = vmatmul.mubr.f32.gmra.mrb[0].mxu0 %v715
    %v896 = vpop.f32.mrb[0].mxu0
    %v897 = vadd.f32 0.0, %v896
    %v898 = vpop.f32.mrb[0].mxu0
    %899 = vmatprep.mubr.f32.mxu0 0.0
    %900 = vmatmul.mubr.f32.gmra.mrb[0].mxu0 %v718
    %v901 = vpop.f32.mrb[0].mxu0
    %v902 = vadd.f32 0.0, %v901
    %v903 = vpop.f32.mrb[0].mxu0
    %904 = vmatprep.mubr.f32.mxu0 0.0
    %905 = vmatmul.mubr.f32.gmra.mrb[0].mxu0 %v721
    %v906 = vpop.f32.mrb[0].mxu0
    %v907 = vadd.f32 0.0, %v906
    %v908 = vpop.f32.mrb[0].mxu0
    %909 = vmatprep.mubr.f32.mxu0 0.0
    %910 = vmatmul.mubr.f32.gmra.mrb[0].mxu0 %v724
    %v911 = vpop.f32.mrb[0].mxu0
    %v912 = vadd.f32 0.0, %v911
    %v913 = vpop.f32.mrb[0].mxu0
    %914 = vmatprep.mubr.f32.mxu0 0.0
    %915 = vmatmul.mubr.f32.gmra.mrb[0].mxu0 %v727
    %v916 = vpop.f32.mrb[0].mxu0
    %v917 = vadd.f32 0.0, %v916
    %v918 = vpop.f32.mrb[0].mxu0
    %919 = vmatprep.mubr.f32.mxu0 0.0
    %920 = vmatmul.mubr.f32.gmra.mrb[0].mxu0 %v730
    %v921 = vpop.f32.mrb[0].mxu0
    %v922 = vadd.f32 0.0, %v921
    %v923 = vpop.f32.mrb[0].mxu0
    %924 = vdwg.mxu0
    %v925 = vlaneseq
    %v926 = vand.u32 %v925, 127
    %vm927 = vcmp.lt.s32.totalorder %v926, 8
    %v928 = vsel %vm927, %v606, -1e+30
    %v929 = vsel %vm927, %v611, -1e+30
    %v930 = vsel %vm927, %v616, -1e+30
    %v931 = vsel %vm927, %v621, -1e+30
    %v932 = vsel %vm927, %v626, -1e+30
    %v933 = vsel %vm927, %v631, -1e+30
    %v934 = vsel %vm927, %v636, -1e+30
    %v935 = vsel %vm927, %v641, -1e+30
    %v936 = vsel %vm927, %v646, -1e+30
    %v937 = vsel %vm927, %v651, -1e+30
    %v938 = vsel %vm927, %v656, -1e+30
    %v939 = vsel %vm927, %v661, -1e+30
    %v940 = vsel %vm927, %v666, -1e+30
    %v941 = vsel %vm927, %v671, -1e+30
    %v942 = vsel %vm927, %v676, -1e+30
    %v943 = vsel %vm927, %v681, -1e+30
    %v944 = vsel %vm927, %v847, -1e+30
    %v945 = vsel %vm927, %v852, -1e+30
    %v946 = vsel %vm927, %v857, -1e+30
    %v947 = vsel %vm927, %v862, -1e+30
    %v948 = vsel %vm927, %v867, -1e+30
    %v949 = vsel %vm927, %v872, -1e+30
    %v950 = vsel %vm927, %v877, -1e+30
    %v951 = vsel %vm927, %v882, -1e+30
    %v952 = vsel %vm927, %v887, -1e+30
    %v953 = vsel %vm927, %v892, -1e+30
    %v954 = vsel %vm927, %v897, -1e+30
    %v955 = vsel %vm927, %v902, -1e+30
    %v956 = vsel %vm927, %v907, -1e+30
    %v957 = vsel %vm927, %v912, -1e+30
    %v958 = vsel %vm927, %v917, -1e+30
    %v959 = vsel %vm927, %v922, -1e+30
    %960 = vmax.xlane.f32.xlu0 %v928
    %v961 = vpop.xlane.xlu0 %960
    %962 = vmax.xlane.f32.xlu0 %v929
    %v963 = vpop.xlane.xlu0 %962
    %964 = vmax.xlane.f32.xlu0 %v930
    %v965 = vpop.xlane.xlu0 %964
    %966 = vmax.xlane.f32.xlu0 %v931
    %v967 = vpop.xlane.xlu0 %966
    %968 = vmax.xlane.f32.xlu0 %v932
    %v969 = vpop.xlane.xlu0 %968
    %970 = vmax.xlane.f32.xlu0 %v933
    %v971 = vpop.xlane.xlu0 %970
    %972 = vmax.xlane.f32.xlu0 %v934
    %v973 = vpop.xlane.xlu0 %972
    %974 = vmax.xlane.f32.xlu0 %v935
    %v975 = vpop.xlane.xlu0 %974
    %976 = vmax.xlane.f32.xlu0 %v936
    %v977 = vpop.xlane.xlu0 %976
    %978 = vmax.xlane.f32.xlu0 %v937
    %v979 = vpop.xlane.xlu0 %978
    %980 = vmax.xlane.f32.xlu0 %v938
    %v981 = vpop.xlane.xlu0 %980
    %982 = vmax.xlane.f32.xlu0 %v939
    %v983 = vpop.xlane.xlu0 %982
    %984 = vmax.xlane.f32.xlu0 %v940
    %v985 = vpop.xlane.xlu0 %984
    %986 = vmax.xlane.f32.xlu0 %v941
    %v987 = vpop.xlane.xlu0 %986
    %988 = vmax.xlane.f32.xlu0 %v942
    %v989 = vpop.xlane.xlu0 %988
    %990 = vmax.xlane.f32.xlu0 %v943
    %v991 = vpop.xlane.xlu0 %990
    %992 = vmax.xlane.f32.xlu0 %v944
    %v993 = vpop.xlane.xlu0 %992
    %994 = vmax.xlane.f32.xlu0 %v945
    %v995 = vpop.xlane.xlu0 %994
    %996 = vmax.xlane.f32.xlu0 %v946
    %v997 = vpop.xlane.xlu0 %996
    %998 = vmax.xlane.f32.xlu0 %v947
    %v999 = vpop.xlane.xlu0 %998
    %1000 = vmax.xlane.f32.xlu0 %v948
    %v1001 = vpop.xlane.xlu0 %1000
    %1002 = vmax.xlane.f32.xlu0 %v949
    %v1003 = vpop.xlane.xlu0 %1002
    %1004 = vmax.xlane.f32.xlu0 %v950
    %v1005 = vpop.xlane.xlu0 %1004
    %1006 = vmax.xlane.f32.xlu0 %v951
    %v1007 = vpop.xlane.xlu0 %1006
    %1008 = vmax.xlane.f32.xlu0 %v952
    %v1009 = vpop.xlane.xlu0 %1008
    %1010 = vmax.xlane.f32.xlu0 %v953
    %v1011 = vpop.xlane.xlu0 %1010
    %1012 = vmax.xlane.f32.xlu0 %v954
    %v1013 = vpop.xlane.xlu0 %1012
    %1014 = vmax.xlane.f32.xlu0 %v955
    %v1015 = vpop.xlane.xlu0 %1014
    %1016 = vmax.xlane.f32.xlu0 %v956
    %v1017 = vpop.xlane.xlu0 %1016
    %1018 = vmax.xlane.f32.xlu0 %v957
    %v1019 = vpop.xlane.xlu0 %1018
    %1020 = vmax.xlane.f32.xlu0 %v958
    %v1021 = vpop.xlane.xlu0 %1020
    %1022 = vmax.xlane.f32.xlu0 %v959
    %v1023 = vpop.xlane.xlu0 %1022
    %v1024 = vsub.f32 %v928, %v961
    %v1025 = vsub.f32 %v929, %v963
    %v1026 = vsub.f32 %v930, %v965
    %v1027 = vsub.f32 %v931, %v967
    %v1028 = vsub.f32 %v932, %v969
    %v1029 = vsub.f32 %v933, %v971
    %v1030 = vsub.f32 %v934, %v973
    %v1031 = vsub.f32 %v935, %v975
    %v1032 = vsub.f32 %v936, %v977
    %v1033 = vsub.f32 %v937, %v979
    %v1034 = vsub.f32 %v938, %v981
    %v1035 = vsub.f32 %v939, %v983
    %v1036 = vsub.f32 %v940, %v985
    %v1037 = vsub.f32 %v941, %v987
    %v1038 = vsub.f32 %v942, %v989
    %v1039 = vsub.f32 %v943, %v991
    %v1040 = vsub.f32 %v944, %v993
    %v1041 = vsub.f32 %v945, %v995
    %v1042 = vsub.f32 %v946, %v997
    %v1043 = vsub.f32 %v947, %v999
    %v1044 = vsub.f32 %v948, %v1001
    %v1045 = vsub.f32 %v949, %v1003
    %v1046 = vsub.f32 %v950, %v1005
    %v1047 = vsub.f32 %v951, %v1007
    %v1048 = vsub.f32 %v952, %v1009
    %v1049 = vsub.f32 %v953, %v1011
    %v1050 = vsub.f32 %v954, %v1013
    %v1051 = vsub.f32 %v955, %v1015
    %v1052 = vsub.f32 %v956, %v1017
    %v1053 = vsub.f32 %v957, %v1019
    %v1054 = vsub.f32 %v958, %v1021
    %v1055 = vsub.f32 %v959, %v1023
    %v1056 = vmul.f32 %v1024, 1.442695
    %v1057 = vpow.pop %v1056
    %v1058 = vmul.f32 %v1025, 1.442695
    %v1059 = vpow.pop %v1058
    %v1060 = vmul.f32 %v1026, 1.442695
    %v1061 = vpow.pop %v1060
    %v1062 = vmul.f32 %v1027, 1.442695
    %v1063 = vpow.pop %v1062
    %v1064 = vmul.f32 %v1028, 1.442695
    %v1065 = vpow.pop %v1064
    %v1066 = vmul.f32 %v1029, 1.442695
    %v1067 = vpow.pop %v1066
    %v1068 = vmul.f32 %v1030, 1.442695
    %v1069 = vpow.pop %v1068
    %v1070 = vmul.f32 %v1031, 1.442695
    %v1071 = vpow.pop %v1070
    %v1072 = vmul.f32 %v1032, 1.442695
    %v1073 = vpow.pop %v1072
    %v1074 = vmul.f32 %v1033, 1.442695
    %v1075 = vpow.pop %v1074
    %v1076 = vmul.f32 %v1034, 1.442695
    %v1077 = vpow.pop %v1076
    %v1078 = vmul.f32 %v1035, 1.442695
    %v1079 = vpow.pop %v1078
    %v1080 = vmul.f32 %v1036, 1.442695
    %v1081 = vpow.pop %v1080
    %v1082 = vmul.f32 %v1037, 1.442695
    %v1083 = vpow.pop %v1082
    %v1084 = vmul.f32 %v1038, 1.442695
    %v1085 = vpow.pop %v1084
    %v1086 = vmul.f32 %v1039, 1.442695
    %v1087 = vpow.pop %v1086
    %v1088 = vmul.f32 %v1040, 1.442695
    %v1089 = vpow.pop %v1088
    %v1090 = vmul.f32 %v1041, 1.442695
    %v1091 = vpow.pop %v1090
    %v1092 = vmul.f32 %v1042, 1.442695
    %v1093 = vpow.pop %v1092
    %v1094 = vmul.f32 %v1043, 1.442695
    %v1095 = vpow.pop %v1094
    %v1096 = vmul.f32 %v1044, 1.442695
    %v1097 = vpow.pop %v1096
    %v1098 = vmul.f32 %v1045, 1.442695
    %v1099 = vpow.pop %v1098
    %v1100 = vmul.f32 %v1046, 1.442695
    %v1101 = vpow.pop %v1100
    %v1102 = vmul.f32 %v1047, 1.442695
    %v1103 = vpow.pop %v1102
    %v1104 = vmul.f32 %v1048, 1.442695
    %v1105 = vpow.pop %v1104
    %v1106 = vmul.f32 %v1049, 1.442695
    %v1107 = vpow.pop %v1106
    %v1108 = vmul.f32 %v1050, 1.442695
    %v1109 = vpow.pop %v1108
    %v1110 = vmul.f32 %v1051, 1.442695
    %v1111 = vpow.pop %v1110
    %v1112 = vmul.f32 %v1052, 1.442695
    %v1113 = vpow.pop %v1112
    %v1114 = vmul.f32 %v1053, 1.442695
    %v1115 = vpow.pop %v1114
    %v1116 = vmul.f32 %v1054, 1.442695
    %v1117 = vpow.pop %v1116
    %v1118 = vmul.f32 %v1055, 1.442695
    %v1119 = vpow.pop %v1118
    %1120 = vadd.xlane.f32.xlu0 %v1057
    %v1121 = vpop.xlane.xlu0 %1120
    %1122 = vadd.xlane.f32.xlu0 %v1059
    %v1123 = vpop.xlane.xlu0 %1122
    %1124 = vadd.xlane.f32.xlu0 %v1061
    %v1125 = vpop.xlane.xlu0 %1124
    %1126 = vadd.xlane.f32.xlu0 %v1063
    %v1127 = vpop.xlane.xlu0 %1126
    %1128 = vadd.xlane.f32.xlu0 %v1065
    %v1129 = vpop.xlane.xlu0 %1128
    %1130 = vadd.xlane.f32.xlu0 %v1067
    %v1131 = vpop.xlane.xlu0 %1130
    %1132 = vadd.xlane.f32.xlu0 %v1069
    %v1133 = vpop.xlane.xlu0 %1132
    %1134 = vadd.xlane.f32.xlu0 %v1071
    %v1135 = vpop.xlane.xlu0 %1134
    %1136 = vadd.xlane.f32.xlu0 %v1073
    %v1137 = vpop.xlane.xlu0 %1136
    %1138 = vadd.xlane.f32.xlu0 %v1075
    %v1139 = vpop.xlane.xlu0 %1138
    %1140 = vadd.xlane.f32.xlu0 %v1077
    %v1141 = vpop.xlane.xlu0 %1140
    %1142 = vadd.xlane.f32.xlu0 %v1079
    %v1143 = vpop.xlane.xlu0 %1142
    %1144 = vadd.xlane.f32.xlu0 %v1081
    %v1145 = vpop.xlane.xlu0 %1144
    %1146 = vadd.xlane.f32.xlu0 %v1083
    %v1147 = vpop.xlane.xlu0 %1146
    %1148 = vadd.xlane.f32.xlu0 %v1085
    %v1149 = vpop.xlane.xlu0 %1148
    %1150 = vadd.xlane.f32.xlu0 %v1087
    %v1151 = vpop.xlane.xlu0 %1150
    %1152 = vadd.xlane.f32.xlu0 %v1089
    %v1153 = vpop.xlane.xlu0 %1152
    %1154 = vadd.xlane.f32.xlu0 %v1091
    %v1155 = vpop.xlane.xlu0 %1154
    %1156 = vadd.xlane.f32.xlu0 %v1093
    %v1157 = vpop.xlane.xlu0 %1156
    %1158 = vadd.xlane.f32.xlu0 %v1095
    %v1159 = vpop.xlane.xlu0 %1158
    %1160 = vadd.xlane.f32.xlu0 %v1097
    %v1161 = vpop.xlane.xlu0 %1160
    %1162 = vadd.xlane.f32.xlu0 %v1099
    %v1163 = vpop.xlane.xlu0 %1162
    %1164 = vadd.xlane.f32.xlu0 %v1101
    %v1165 = vpop.xlane.xlu0 %1164
    %1166 = vadd.xlane.f32.xlu0 %v1103
    %v1167 = vpop.xlane.xlu0 %1166
    %1168 = vadd.xlane.f32.xlu0 %v1105
    %v1169 = vpop.xlane.xlu0 %1168
    %1170 = vadd.xlane.f32.xlu0 %v1107
    %v1171 = vpop.xlane.xlu0 %1170
    %1172 = vadd.xlane.f32.xlu0 %v1109
    %v1173 = vpop.xlane.xlu0 %1172
    %1174 = vadd.xlane.f32.xlu0 %v1111
    %v1175 = vpop.xlane.xlu0 %1174
    %1176 = vadd.xlane.f32.xlu0 %v1113
    %v1177 = vpop.xlane.xlu0 %1176
    %1178 = vadd.xlane.f32.xlu0 %v1115
    %v1179 = vpop.xlane.xlu0 %1178
    %1180 = vadd.xlane.f32.xlu0 %v1117
    %v1181 = vpop.xlane.xlu0 %1180
    %1182 = vadd.xlane.f32.xlu0 %v1119
    %v1183 = vpop.xlane.xlu0 %1182
    %v1184 = vrcp.pop %v1121
    %v1185 = vmul.f32 1.0, %v1184
    %v1186 = vrcp.pop %v1123
    %v1187 = vmul.f32 1.0, %v1186
    %v1188 = vrcp.pop %v1125
    %v1189 = vmul.f32 1.0, %v1188
    %v1190 = vrcp.pop %v1127
    %v1191 = vmul.f32 1.0, %v1190
    %v1192 = vrcp.pop %v1129
    %v1193 = vmul.f32 1.0, %v1192
    %v1194 = vrcp.pop %v1131
    %v1195 = vmul.f32 1.0, %v1194
    %v1196 = vrcp.pop %v1133
    %v1197 = vmul.f32 1.0, %v1196
    %v1198 = vrcp.pop %v1135
    %v1199 = vmul.f32 1.0, %v1198
    %v1200 = vrcp.pop %v1137
    %v1201 = vmul.f32 1.0, %v1200
    %v1202 = vrcp.pop %v1139
    %v1203 = vmul.f32 1.0, %v1202
    %v1204 = vrcp.pop %v1141
    %v1205 = vmul.f32 1.0, %v1204
    %v1206 = vrcp.pop %v1143
    %v1207 = vmul.f32 1.0, %v1206
    %v1208 = vrcp.pop %v1145
    %v1209 = vmul.f32 1.0, %v1208
    %v1210 = vrcp.pop %v1147
    %v1211 = vmul.f32 1.0, %v1210
    %v1212 = vrcp.pop %v1149
    %v1213 = vmul.f32 1.0, %v1212
    %v1214 = vrcp.pop %v1151
    %v1215 = vmul.f32 1.0, %v1214
    %v1216 = vrcp.pop %v1153
    %v1217 = vmul.f32 1.0, %v1216
    %v1218 = vrcp.pop %v1155
    %v1219 = vmul.f32 1.0, %v1218
    %v1220 = vrcp.pop %v1157
    %v1221 = vmul.f32 1.0, %v1220
    %v1222 = vrcp.pop %v1159
    %v1223 = vmul.f32 1.0, %v1222
    %v1224 = vrcp.pop %v1161
    %v1225 = vmul.f32 1.0, %v1224
    %v1226 = vrcp.pop %v1163
    %v1227 = vmul.f32 1.0, %v1226
    %v1228 = vrcp.pop %v1165
    %v1229 = vmul.f32 1.0, %v1228
    %v1230 = vrcp.pop %v1167
    %v1231 = vmul.f32 1.0, %v1230
    %v1232 = vrcp.pop %v1169
    %v1233 = vmul.f32 1.0, %v1232
    %v1234 = vrcp.pop %v1171
    %v1235 = vmul.f32 1.0, %v1234
    %v1236 = vrcp.pop %v1173
    %v1237 = vmul.f32 1.0, %v1236
    %v1238 = vrcp.pop %v1175
    %v1239 = vmul.f32 1.0, %v1238
    %v1240 = vrcp.pop %v1177
    %v1241 = vmul.f32 1.0, %v1240
    %v1242 = vrcp.pop %v1179
    %v1243 = vmul.f32 1.0, %v1242
    %v1244 = vrcp.pop %v1181
    %v1245 = vmul.f32 1.0, %v1244
    %v1246 = vrcp.pop %v1183
    %v1247 = vmul.f32 1.0, %v1246
    %v1248 = vmul.f32 %v1057, %v1185
    %v1249 = vmul.f32 %v1059, %v1187
    %v1250 = vmul.f32 %v1061, %v1189
    %v1251 = vmul.f32 %v1063, %v1191
    %v1252 = vmul.f32 %v1065, %v1193
    %v1253 = vmul.f32 %v1067, %v1195
    %v1254 = vmul.f32 %v1069, %v1197
    %v1255 = vmul.f32 %v1071, %v1199
    %v1256 = vmul.f32 %v1073, %v1201
    %v1257 = vmul.f32 %v1075, %v1203
    %v1258 = vmul.f32 %v1077, %v1205
    %v1259 = vmul.f32 %v1079, %v1207
    %v1260 = vmul.f32 %v1081, %v1209
    %v1261 = vmul.f32 %v1083, %v1211
    %v1262 = vmul.f32 %v1085, %v1213
    %v1263 = vmul.f32 %v1087, %v1215
    %v1264 = vmul.f32 %v1089, %v1217
    %v1265 = vmul.f32 %v1091, %v1219
    %v1266 = vmul.f32 %v1093, %v1221
    %v1267 = vmul.f32 %v1095, %v1223
    %v1268 = vmul.f32 %v1097, %v1225
    %v1269 = vmul.f32 %v1099, %v1227
    %v1270 = vmul.f32 %v1101, %v1229
    %v1271 = vmul.f32 %v1103, %v1231
    %v1272 = vmul.f32 %v1105, %v1233
    %v1273 = vmul.f32 %v1107, %v1235
    %v1274 = vmul.f32 %v1109, %v1237
    %v1275 = vmul.f32 %v1111, %v1239
    %v1276 = vmul.f32 %v1113, %v1241
    %v1277 = vmul.f32 %v1115, %v1243
    %v1278 = vmul.f32 %v1117, %v1245
    %v1279 = vmul.f32 %v1119, %v1247
    %1280 = vmatprep.subr.mxu0 0.0
    %1281 = vmatpush1.msra.mxu0 %v84
    %1282 = vmatprep.subr.mxu0 0.0
    %1283 = vmatpush1.msra.mxu0 %v85
    %1284 = vmatprep.subr.mxu0 0.0
    %1285 = vmatpush1.msra.mxu0 %v86
    %1286 = vmatprep.subr.mxu0 0.0
    %1287 = vmatpush1.msra.mxu0 %v87
    %1288 = vmatprep.subr.mxu0 0.0
    %1289 = vmatpush1.msra.mxu0 %v88
    %1290 = vmatprep.subr.mxu0 0.0
    %1291 = vmatpush1.msra.mxu0 %v89
    %1292 = vmatprep.subr.mxu0 0.0
    %1293 = vmatpush1.msra.mxu0 %v90
    %1294 = vmatprep.subr.mxu0 0.0
    %1295 = vmatpush1.msra.mxu0 %v91
    %1296 = vmatprep.subr.mxu0 0.0
    %1297 = vmatpush1.msra.mxu0 %v92
    %1298 = vmatprep.subr.mxu0 0.0
    %1299 = vmatpush1.msra.mxu0 %v93
    %1300 = vmatprep.subr.mxu0 0.0
    %1301 = vmatpush1.msra.mxu0 %v94
    %1302 = vmatprep.subr.mxu0 0.0
    %1303 = vmatpush1.msra.mxu0 %v95
    %1304 = vmatprep.subr.mxu0 0.0
    %1305 = vmatpush1.msra.mxu0 %v96
    %1306 = vmatprep.subr.mxu0 0.0
    %1307 = vmatpush1.msra.mxu0 %v97
    %1308 = vmatprep.subr.mxu0 0.0
    %1309 = vmatpush1.msra.mxu0 %v98
    %1310 = vmatprep.subr.mxu0 0.0
    %1311 = vmatpush1.msra.mxu0 %v99
    %1312 = vmatprep.subr.mxu0 0.0
    %1313 = vmatpush1.msra.mxu0 0.0
    %1314 = vmatprep.subr.mxu0 0.0
    %1315 = vmatpush1.msra.mxu0 0.0
    %1316 = vmatprep.subr.mxu0 0.0
    %1317 = vmatpush1.msra.mxu0 0.0
    %1318 = vmatprep.subr.mxu0 0.0
    %1319 = vmatpush1.msra.mxu0 0.0
    %1320 = vmatprep.subr.mxu0 0.0
    %1321 = vmatpush1.msra.mxu0 0.0
    %1322 = vmatprep.subr.mxu0 0.0
    %1323 = vmatpush1.msra.mxu0 0.0
    %1324 = vmatprep.subr.mxu0 0.0
    %1325 = vmatpush1.msra.mxu0 0.0
    %1326 = vmatprep.subr.mxu0 0.0
    %1327 = vmatpush1.msra.mxu0 0.0
    %1328 = vmatprep.subr.mxu0 0.0
    %1329 = vmatpush1.msra.mxu0 0.0
    %1330 = vmatprep.subr.mxu0 0.0
    %1331 = vmatpush1.msra.mxu0 0.0
    %1332 = vmatprep.subr.mxu0 0.0
    %1333 = vmatpush1.msra.mxu0 0.0
    %1334 = vmatprep.subr.mxu0 0.0
    %1335 = vmatpush1.msra.mxu0 0.0
    %1336 = vmatprep.subr.mxu0 0.0
    %1337 = vmatpush1.msra.mxu0 0.0
    %1338 = vmatprep.subr.mxu0 0.0
    %1339 = vmatpush1.msra.mxu0 0.0
    %1340 = vmatprep.subr.mxu0 0.0
    %1341 = vmatpush1.msra.mxu0 0.0
    %1342 = vmatprep.subr.mxu0 0.0
    %1343 = vmatpush1.msra.mxu0 0.0
    %1344 = vmatprep.mubr.f32.mxu0 0.0
    %1345 = vmatmul.mubr.f32.gmra.mrb[0].mxu0 %v1248
    %v1346 = vpop.f32.mrb[0].mxu0
    %v1347 = vadd.f32 0.0, %v1346
    %v1348 = vpop.f32.mrb[0].mxu0
    %1349 = vmatprep.mubr.f32.mxu0 0.0
    %1350 = vmatmul.mubr.f32.gmra.mrb[0].mxu0 %v1249
    %v1351 = vpop.f32.mrb[0].mxu0
    %v1352 = vadd.f32 0.0, %v1351
    %v1353 = vpop.f32.mrb[0].mxu0
    %1354 = vmatprep.mubr.f32.mxu0 0.0
    %1355 = vmatmul.mubr.f32.gmra.mrb[0].mxu0 %v1250
    %v1356 = vpop.f32.mrb[0].mxu0
    %v1357 = vadd.f32 0.0, %v1356
    %v1358 = vpop.f32.mrb[0].mxu0
    %1359 = vmatprep.mubr.f32.mxu0 0.0
    %1360 = vmatmul.mubr.f32.gmra.mrb[0].mxu0 %v1251
    %v1361 = vpop.f32.mrb[0].mxu0
    %v1362 = vadd.f32 0.0, %v1361
    %v1363 = vpop.f32.mrb[0].mxu0
    %1364 = vmatprep.mubr.f32.mxu0 0.0
    %1365 = vmatmul.mubr.f32.gmra.mrb[0].mxu0 %v1252
    %v1366 = vpop.f32.mrb[0].mxu0
    %v1367 = vadd.f32 0.0, %v1366
    %v1368 = vpop.f32.mrb[0].mxu0
    %1369 = vmatprep.mubr.f32.mxu0 0.0
    %1370 = vmatmul.mubr.f32.gmra.mrb[0].mxu0 %v1253
    %v1371 = vpop.f32.mrb[0].mxu0
    %v1372 = vadd.f32 0.0, %v1371
    %v1373 = vpop.f32.mrb[0].mxu0
    %1374 = vmatprep.mubr.f32.mxu0 0.0
    %1375 = vmatmul.mubr.f32.gmra.mrb[0].mxu0 %v1254
    %v1376 = vpop.f32.mrb[0].mxu0
    %v1377 = vadd.f32 0.0, %v1376
    %v1378 = vpop.f32.mrb[0].mxu0
    %1379 = vmatprep.mubr.f32.mxu0 0.0
    %1380 = vmatmul.mubr.f32.gmra.mrb[0].mxu0 %v1255
    %v1381 = vpop.f32.mrb[0].mxu0
    %v1382 = vadd.f32 0.0, %v1381
    %v1383 = vpop.f32.mrb[0].mxu0
    %1384 = vmatprep.mubr.f32.mxu0 0.0
    %1385 = vmatmul.mubr.f32.gmra.mrb[0].mxu0 %v1256
    %v1386 = vpop.f32.mrb[0].mxu0
    %v1387 = vadd.f32 0.0, %v1386
    %v1388 = vpop.f32.mrb[0].mxu0
    %1389 = vmatprep.mubr.f32.mxu0 0.0
    %1390 = vmatmul.mubr.f32.gmra.mrb[0].mxu0 %v1257
    %v1391 = vpop.f32.mrb[0].mxu0
    %v1392 = vadd.f32 0.0, %v1391
    %v1393 = vpop.f32.mrb[0].mxu0
    %1394 = vmatprep.mubr.f32.mxu0 0.0
    %1395 = vmatmul.mubr.f32.gmra.mrb[0].mxu0 %v1258
    %v1396 = vpop.f32.mrb[0].mxu0
    %v1397 = vadd.f32 0.0, %v1396
    %v1398 = vpop.f32.mrb[0].mxu0
    %1399 = vmatprep.mubr.f32.mxu0 0.0
    %1400 = vmatmul.mubr.f32.gmra.mrb[0].mxu0 %v1259
    %v1401 = vpop.f32.mrb[0].mxu0
    %v1402 = vadd.f32 0.0, %v1401
    %v1403 = vpop.f32.mrb[0].mxu0
    %1404 = vmatprep.mubr.f32.mxu0 0.0
    %1405 = vmatmul.mubr.f32.gmra.mrb[0].mxu0 %v1260
    %v1406 = vpop.f32.mrb[0].mxu0
    %v1407 = vadd.f32 0.0, %v1406
    %v1408 = vpop.f32.mrb[0].mxu0
    %1409 = vmatprep.mubr.f32.mxu0 0.0
    %1410 = vmatmul.mubr.f32.gmra.mrb[0].mxu0 %v1261
    %v1411 = vpop.f32.mrb[0].mxu0
    %v1412 = vadd.f32 0.0, %v1411
    %v1413 = vpop.f32.mrb[0].mxu0
    %1414 = vmatprep.mubr.f32.mxu0 0.0
    %1415 = vmatmul.mubr.f32.gmra.mrb[0].mxu0 %v1262
    %v1416 = vpop.f32.mrb[0].mxu0
    %v1417 = vadd.f32 0.0, %v1416
    %v1418 = vpop.f32.mrb[0].mxu0
    %1419 = vmatprep.mubr.f32.mxu0 0.0
    %1420 = vmatmul.mubr.f32.gmra.mrb[0].mxu0 %v1263
    %v1421 = vpop.f32.mrb[0].mxu0
    %v1422 = vadd.f32 0.0, %v1421
    %v1423 = vpop.f32.mrb[0].mxu0
    %1424 = vdwg.mxu0
    %1425 = vmatprep.subr.mxu0 0.0
    %1426 = vmatpush1.msra.mxu0 %v100
    %1427 = vmatprep.subr.mxu0 0.0
    %1428 = vmatpush1.msra.mxu0 %v101
    %1429 = vmatprep.subr.mxu0 0.0
    %1430 = vmatpush1.msra.mxu0 %v102
    %1431 = vmatprep.subr.mxu0 0.0
    %1432 = vmatpush1.msra.mxu0 %v103
    %1433 = vmatprep.subr.mxu0 0.0
    %1434 = vmatpush1.msra.mxu0 %v104
    %1435 = vmatprep.subr.mxu0 0.0
    %1436 = vmatpush1.msra.mxu0 %v105
    %1437 = vmatprep.subr.mxu0 0.0
    %1438 = vmatpush1.msra.mxu0 %v106
    %1439 = vmatprep.subr.mxu0 0.0
    %1440 = vmatpush1.msra.mxu0 %v107
    %1441 = vmatprep.subr.mxu0 0.0
    %1442 = vmatpush1.msra.mxu0 %v108
    %1443 = vmatprep.subr.mxu0 0.0
    %1444 = vmatpush1.msra.mxu0 %v109
    %1445 = vmatprep.subr.mxu0 0.0
    %1446 = vmatpush1.msra.mxu0 %v110
    %1447 = vmatprep.subr.mxu0 0.0
    %1448 = vmatpush1.msra.mxu0 %v111
    %1449 = vmatprep.subr.mxu0 0.0
    %1450 = vmatpush1.msra.mxu0 %v112
    %1451 = vmatprep.subr.mxu0 0.0
    %1452 = vmatpush1.msra.mxu0 %v113
    %1453 = vmatprep.subr.mxu0 0.0
    %1454 = vmatpush1.msra.mxu0 %v114
    %1455 = vmatprep.subr.mxu0 0.0
    %1456 = vmatpush1.msra.mxu0 %v115
    %1457 = vmatprep.subr.mxu0 0.0
    %1458 = vmatpush1.msra.mxu0 0.0
    %1459 = vmatprep.subr.mxu0 0.0
    %1460 = vmatpush1.msra.mxu0 0.0
    %1461 = vmatprep.subr.mxu0 0.0
    %1462 = vmatpush1.msra.mxu0 0.0
    %1463 = vmatprep.subr.mxu0 0.0
    %1464 = vmatpush1.msra.mxu0 0.0
    %1465 = vmatprep.subr.mxu0 0.0
    %1466 = vmatpush1.msra.mxu0 0.0
    %1467 = vmatprep.subr.mxu0 0.0
    %1468 = vmatpush1.msra.mxu0 0.0
    %1469 = vmatprep.subr.mxu0 0.0
    %1470 = vmatpush1.msra.mxu0 0.0
    %1471 = vmatprep.subr.mxu0 0.0
    %1472 = vmatpush1.msra.mxu0 0.0
    %1473 = vmatprep.subr.mxu0 0.0
    %1474 = vmatpush1.msra.mxu0 0.0
    %1475 = vmatprep.subr.mxu0 0.0
    %1476 = vmatpush1.msra.mxu0 0.0
    %1477 = vmatprep.subr.mxu0 0.0
    %1478 = vmatpush1.msra.mxu0 0.0
    %1479 = vmatprep.subr.mxu0 0.0
    %1480 = vmatpush1.msra.mxu0 0.0
    %1481 = vmatprep.subr.mxu0 0.0
    %1482 = vmatpush1.msra.mxu0 0.0
    %1483 = vmatprep.subr.mxu0 0.0
    %1484 = vmatpush1.msra.mxu0 0.0
    %1485 = vmatprep.subr.mxu0 0.0
    %1486 = vmatpush1.msra.mxu0 0.0
    %1487 = vmatprep.subr.mxu0 0.0
    %1488 = vmatpush1.msra.mxu0 0.0
    %1489 = vmatprep.mubr.f32.mxu0 0.0
    %1490 = vmatmul.mubr.f32.gmra.mrb[0].mxu0 %v1264
    %v1491 = vpop.f32.mrb[0].mxu0
    %v1492 = vadd.f32 0.0, %v1491
    %v1493 = vpop.f32.mrb[0].mxu0
    %1494 = vmatprep.mubr.f32.mxu0 0.0
    %1495 = vmatmul.mubr.f32.gmra.mrb[0].mxu0 %v1265
    %v1496 = vpop.f32.mrb[0].mxu0
    %v1497 = vadd.f32 0.0, %v1496
    %v1498 = vpop.f32.mrb[0].mxu0
    %1499 = vmatprep.mubr.f32.mxu0 0.0
    %1500 = vmatmul.mubr.f32.gmra.mrb[0].mxu0 %v1266
    %v1501 = vpop.f32.mrb[0].mxu0
    %v1502 = vadd.f32 0.0, %v1501
    %v1503 = vpop.f32.mrb[0].mxu0
    %1504 = vmatprep.mubr.f32.mxu0 0.0
    %1505 = vmatmul.mubr.f32.gmra.mrb[0].mxu0 %v1267
    %v1506 = vpop.f32.mrb[0].mxu0
    %v1507 = vadd.f32 0.0, %v1506
    %v1508 = vpop.f32.mrb[0].mxu0
    %1509 = vmatprep.mubr.f32.mxu0 0.0
    %1510 = vmatmul.mubr.f32.gmra.mrb[0].mxu0 %v1268
    %v1511 = vpop.f32.mrb[0].mxu0
    %v1512 = vadd.f32 0.0, %v1511
    %v1513 = vpop.f32.mrb[0].mxu0
    %1514 = vmatprep.mubr.f32.mxu0 0.0
    %1515 = vmatmul.mubr.f32.gmra.mrb[0].mxu0 %v1269
    %v1516 = vpop.f32.mrb[0].mxu0
    %v1517 = vadd.f32 0.0, %v1516
    %v1518 = vpop.f32.mrb[0].mxu0
    %1519 = vmatprep.mubr.f32.mxu0 0.0
    %1520 = vmatmul.mubr.f32.gmra.mrb[0].mxu0 %v1270
    %v1521 = vpop.f32.mrb[0].mxu0
    %v1522 = vadd.f32 0.0, %v1521
    %v1523 = vpop.f32.mrb[0].mxu0
    %1524 = vmatprep.mubr.f32.mxu0 0.0
    %1525 = vmatmul.mubr.f32.gmra.mrb[0].mxu0 %v1271
    %v1526 = vpop.f32.mrb[0].mxu0
    %v1527 = vadd.f32 0.0, %v1526
    %v1528 = vpop.f32.mrb[0].mxu0
    %1529 = vmatprep.mubr.f32.mxu0 0.0
    %1530 = vmatmul.mubr.f32.gmra.mrb[0].mxu0 %v1272
    %v1531 = vpop.f32.mrb[0].mxu0
    %v1532 = vadd.f32 0.0, %v1531
    %v1533 = vpop.f32.mrb[0].mxu0
    %1534 = vmatprep.mubr.f32.mxu0 0.0
    %1535 = vmatmul.mubr.f32.gmra.mrb[0].mxu0 %v1273
    %v1536 = vpop.f32.mrb[0].mxu0
    %v1537 = vadd.f32 0.0, %v1536
    %v1538 = vpop.f32.mrb[0].mxu0
    %1539 = vmatprep.mubr.f32.mxu0 0.0
    %1540 = vmatmul.mubr.f32.gmra.mrb[0].mxu0 %v1274
    %v1541 = vpop.f32.mrb[0].mxu0
    %v1542 = vadd.f32 0.0, %v1541
    %v1543 = vpop.f32.mrb[0].mxu0
    %1544 = vmatprep.mubr.f32.mxu0 0.0
    %1545 = vmatmul.mubr.f32.gmra.mrb[0].mxu0 %v1275
    %v1546 = vpop.f32.mrb[0].mxu0
    %v1547 = vadd.f32 0.0, %v1546
    %v1548 = vpop.f32.mrb[0].mxu0
    %1549 = vmatprep.mubr.f32.mxu0 0.0
    %1550 = vmatmul.mubr.f32.gmra.mrb[0].mxu0 %v1276
    %v1551 = vpop.f32.mrb[0].mxu0
    %v1552 = vadd.f32 0.0, %v1551
    %v1553 = vpop.f32.mrb[0].mxu0
    %1554 = vmatprep.mubr.f32.mxu0 0.0
    %1555 = vmatmul.mubr.f32.gmra.mrb[0].mxu0 %v1277
    %v1556 = vpop.f32.mrb[0].mxu0
    %v1557 = vadd.f32 0.0, %v1556
    %v1558 = vpop.f32.mrb[0].mxu0
    %1559 = vmatprep.mubr.f32.mxu0 0.0
    %1560 = vmatmul.mubr.f32.gmra.mrb[0].mxu0 %v1278
    %v1561 = vpop.f32.mrb[0].mxu0
    %v1562 = vadd.f32 0.0, %v1561
    %v1563 = vpop.f32.mrb[0].mxu0
    %1564 = vmatprep.mubr.f32.mxu0 0.0
    %1565 = vmatmul.mubr.f32.gmra.mrb[0].mxu0 %v1279
    %v1566 = vpop.f32.mrb[0].mxu0
    %v1567 = vadd.f32 0.0, %v1566
    %v1568 = vpop.f32.mrb[0].mxu0
    %1569 = vdwg.mxu0
    %1570 = vst.msk [vmem:[%s4] sm:$0xff] %vm120, %v1347
    %1571 = vst.msk [vmem:[%s4 + $0x8] sm:$0xff] %vm120, %v1352
    %1572 = vst.msk [vmem:[%s4 + $0x10] sm:$0xff] %vm120, %v1357
    %1573 = vst.msk [vmem:[%s4 + $0x18] sm:$0xff] %vm120, %v1362
    %1574 = vst.msk [vmem:[%s4 + $0x20] sm:$0xff] %vm120, %v1367
    %1575 = vst.msk [vmem:[%s4 + $0x28] sm:$0xff] %vm120, %v1372
    %1576 = vst.msk [vmem:[%s4 + $0x30] sm:$0xff] %vm120, %v1377
    %1577 = vst.msk [vmem:[%s4 + $0x38] sm:$0xff] %vm120, %v1382
    %1578 = vst.msk [vmem:[%s4 + $0x40] sm:$0xff] %vm120, %v1387
    %1579 = vst.msk [vmem:[%s4 + $0x48] sm:$0xff] %vm120, %v1392
    %1580 = vst.msk [vmem:[%s4 + $0x50] sm:$0xff] %vm120, %v1397
    %1581 = vst.msk [vmem:[%s4 + $0x58] sm:$0xff] %vm120, %v1402
    %1582 = vst.msk [vmem:[%s4 + $0x60] sm:$0xff] %vm120, %v1407
    %1583 = vst.msk [vmem:[%s4 + $0x68] sm:$0xff] %vm120, %v1412
    %1584 = vst.msk [vmem:[%s4 + $0x70] sm:$0xff] %vm120, %v1417
    %1585 = vst.msk [vmem:[%s4 + $0x78] sm:$0xff] %vm120, %v1422
    %1586 = vst.msk [vmem:[%s4 + $0x80] sm:$0xff] %vm120, %v1492
    %1587 = vst.msk [vmem:[%s4 + $0x88] sm:$0xff] %vm120, %v1497
    %1588 = vst.msk [vmem:[%s4 + $0x90] sm:$0xff] %vm120, %v1502
    %1589 = vst.msk [vmem:[%s4 + $0x98] sm:$0xff] %vm120, %v1507
    %1590 = vst.msk [vmem:[%s4 + $0xa0] sm:$0xff] %vm120, %v1512
    %1591 = vst.msk [vmem:[%s4 + $0xa8] sm:$0xff] %vm120, %v1517
    %1592 = vst.msk [vmem:[%s4 + $0xb0] sm:$0xff] %vm120, %v1522
    %1593 = vst.msk [vmem:[%s4 + $0xb8] sm:$0xff] %vm120, %v1527
    %1594 = vst.msk [vmem:[%s4 + $0xc0] sm:$0xff] %vm120, %v1532
    %1595 = vst.msk [vmem:[%s4 + $0xc8] sm:$0xff] %vm120, %v1537
    %1596 = vst.msk [vmem:[%s4 + $0xd0] sm:$0xff] %vm120, %v1542
    %1597 = vst.msk [vmem:[%s4 + $0xd8] sm:$0xff] %vm120, %v1547
    %1598 = vst.msk [vmem:[%s4 + $0xe0] sm:$0xff] %vm120, %v1552
    %1599 = vst.msk [vmem:[%s4 + $0xe8] sm:$0xff] %vm120, %v1557
    %1600 = vst.msk [vmem:[%s4 + $0xf0] sm:$0xff] %vm120, %v1562
    %1601 = vst.msk [vmem:[%s4 + $0xf8] sm:$0xff] %vm120, %v1567
    %1602 = vst [vmem:[#allocation2] sm:$0xff] %v1248
    %1603 = vst [vmem:[#allocation2 + $0x8] sm:$0xff] %v1249
    %1604 = vst [vmem:[#allocation2 + $0x10] sm:$0xff] %v1250
    %1605 = vst [vmem:[#allocation2 + $0x18] sm:$0xff] %v1251
    %1606 = vst [vmem:[#allocation2 + $0x20] sm:$0xff] %v1252
    %1607 = vst [vmem:[#allocation2 + $0x28] sm:$0xff] %v1253
    %1608 = vst [vmem:[#allocation2 + $0x30] sm:$0xff] %v1254
    %1609 = vst [vmem:[#allocation2 + $0x38] sm:$0xff] %v1255
    %1610 = vst [vmem:[#allocation2 + $0x40] sm:$0xff] %v1256
    %1611 = vst [vmem:[#allocation2 + $0x48] sm:$0xff] %v1257
    %1612 = vst [vmem:[#allocation2 + $0x50] sm:$0xff] %v1258
    %1613 = vst [vmem:[#allocation2 + $0x58] sm:$0xff] %v1259
    %1614 = vst [vmem:[#allocation2 + $0x60] sm:$0xff] %v1260
    %1615 = vst [vmem:[#allocation2 + $0x68] sm:$0xff] %v1261
    %1616 = vst [vmem:[#allocation2 + $0x70] sm:$0xff] %v1262
    %1617 = vst [vmem:[#allocation2 + $0x78] sm:$0xff] %v1263
    %1618 = vst [vmem:[#allocation2 + $0x80] sm:$0xff] %v1264
    %1619 = vst [vmem:[#allocation2 + $0x88] sm:$0xff] %v1265
    %1620 = vst [vmem:[#allocation2 + $0x90] sm:$0xff] %v1266
    %1621 = vst [vmem:[#allocation2 + $0x98] sm:$0xff] %v1267
    %1622 = vst [vmem:[#allocation2 + $0xa0] sm:$0xff] %v1268
    %1623 = vst [vmem:[#allocation2 + $0xa8] sm:$0xff] %v1269
    %1624 = vst [vmem:[#allocation2 + $0xb0] sm:$0xff] %v1270
    %1625 = vst [vmem:[#allocation2 + $0xb8] sm:$0xff] %v1271
    %1626 = vst [vmem:[#allocation2 + $0xc0] sm:$0xff] %v1272
    %1627 = vst [vmem:[#allocation2 + $0xc8] sm:$0xff] %v1273
    %1628 = vst [vmem:[#allocation2 + $0xd0] sm:$0xff] %v1274
    %1629 = vst [vmem:[#allocation2 + $0xd8] sm:$0xff] %v1275
    %1630 = vst [vmem:[#allocation2 + $0xe0] sm:$0xff] %v1276
    %1631 = vst [vmem:[#allocation2 + $0xe8] sm:$0xff] %v1277
    %1632 = vst [vmem:[#allocation2 + $0xf0] sm:$0xff] %v1278
    %1633 = vst [vmem:[#allocation2 + $0xf8] sm:$0xff] %v1279
    // Predicated region
    $region18: #{tpu_custom_call.1} parent=1 // pred_check
      _
    $region19: #{tpu_custom_call.1} parent=1 // pred_check_branch
      %1635 = sbr.rel (0) target = $region21
    $region20: #{tpu_custom_call.1} parent=1 // pred_region
      _
    $region21: #{tpu_custom_call.1} parent=1 // pred_fallthru
      _
    // Predicated region
    $region22: #{tpu_custom_call.1} parent=1 // pred_check
      _
    $region23: #{tpu_custom_call.1} parent=1 // pred_check_branch
      %1637 = sbr.rel (0) target = $region25
    $region24: #{tpu_custom_call.1} parent=1 // pred_region
      %s1639 = ssub.s32 4096, 4096
      %1640 = vsyncadd [#allocation3], %s1639
      %s1641 = sshll.u32 [#allocation2], 4
      %s1642 = int_to_ptr.vmem [resolvable:$true] %s1641
      %1647 = dma.vmem_to_hbm [thread:$0]  %s1642, 4096, %s5, [#allocation3], 128, 128, 8
    $region25: #{tpu_custom_call.1} parent=1 // pred_fallthru
      _
    // Predicated region
    $region26: #{tpu_custom_call.1} parent=1 // pred_check
      _
    $region27: #{tpu_custom_call.1} parent=1 // pred_check_branch
      %1649 = sbr.rel (0) target = $region29
    $region28: #{tpu_custom_call.1} parent=1 // pred_region
      _
    $region29: #{tpu_custom_call.1} parent=1 // pred_fallthru
      _
    // Predicated region
    $region30: #{tpu_custom_call.1} parent=1 // pred_check
      _
    $region31: #{tpu_custom_call.1} parent=1 // pred_check_branch
      %1651 = sbr.rel (0) target = $region33
    $region32: #{tpu_custom_call.1} parent=1 // pred_region
      %1652 = dma.done [#allocation3], 4096
    $region33: #{tpu_custom_call.1} parent=1 // pred_fallthru
      _
    %1653 = vsyncpa [#allocation3], 1

</llo_original>
